<compile_context>
chip_gen: v7x
topology: tpu7x:2x2x1
jax: 0.10.0
libtpu: 0.0.40
codegen_flags: <defaults>
</compile_context>

<pallas_src>
import jax
import jax.numpy as jnp
from jax import lax
from jax.experimental import pallas as pl
from jax.experimental.pallas import tpu as pltpu

ENC_DIMS = [300, 256, 128, 64, 32]   # encoder Linear layer dims
DEC_DIMS = [32, 64, 128, 256, 300]   # decoder Linear layer dims

D_IN = 300                 # input features
OUT_W = 384                # merged output slab lanes (3 * 128, lane-dense)
DEC_W = 300                # decoded occupies lanes [0, 300)
ENC_OFF = 300              # encoded occupies lanes [300, 332)
ENC_W = 32
BIAS_ROWS = 8              # packed-bias sublane count (7 layers, padded to 8)
# per-layer output widths in kernel order (after fusion + lane padding)
LAYER_OUT = (256, 128, 64, OUT_W, 128, 256, OUT_W)


def _round_up(n, m):
    return ((n + m - 1) // m) * m


# ---------------------------------------------------------------------------
# Kernel
# ---------------------------------------------------------------------------
def _autoencoder_kernel(x_ref, w0_ref, w1_ref, w2_ref, wf_ref, w5_ref, w6_ref,
                        w7_ref, bias_ref, out_ref):
    f32 = jnp.float32
    bf16 = jnp.bfloat16

    biases = bias_ref[...]                               # (8, 384) f32, tiny

    def dense(h, w_ref, row):
        dout = LAYER_OUT[row]
        z = jnp.dot(h, w_ref[...], preferred_element_type=f32)
        return z + biases[row:row + 1, :dout]            # (1, dout) broadcast

    def act(z):
        # tanh on bf16 operands: EUP bf16 path on v6e/v7x (result feeds the
        # next bf16 matmul directly, so no extra cast vs. the f32 version).
        return jnp.tanh(z.astype(bf16))

    h = x_ref[...].astype(bf16)                          # (TB, 300) cast in-kernel

    # ---- encoder: Linear+Tanh x3 ----
    h = act(dense(h, w0_ref, 0))                         # (TB, 256)
    h = act(dense(h, w1_ref, 1))                         # (TB, 128)
    h = act(dense(h, w2_ref, 2))                         # (TB, 64)

    # ---- fused bottleneck: one 64x384 matmul produces the decoder layer-0
    #      pre-activation in lanes 0:64 and the encoded output already placed
    #      at its final lane offset 300:332 (zeros elsewhere).
    fused = dense(h, wf_ref, 3)                          # (TB, 384) f32
    h = act(fused[:, :64])                               # (TB, 64)

    # ---- decoder: Linear+Tanh x2, then Linear(+Sigmoid) padded to 384 lanes
    h = act(dense(h, w5_ref, 4))                         # (TB, 128)
    h = act(dense(h, w6_ref, 5))                         # (TB, 256)
    z = dense(h, w7_ref, 6)                              # (TB, 384) f32; dec preact in 0:300

    # sigmoid(z) == 0.5*(tanh(0.5*z)+1); tanh evaluated in bf16.
    t = jnp.tanh((0.5 * z).astype(bf16)).astype(f32)
    dec = 0.5 * (t + 1.0)                                # (TB, 384) f32

    # Merge: lanes [0,300) <- decoded, lanes [300,384) <- fused (encoded at
    # 300:332, exact zeros at 332:384).  Single lane-dense bf16 store.
    lane = lax.broadcasted_iota(jnp.int32, (1, OUT_W), 1)
    merged = jnp.where(lane < DEC_W, dec, fused)
    out_ref[...] = merged.astype(bf16)


# ---------------------------------------------------------------------------
# Parameter construction / preparation
# ---------------------------------------------------------------------------
def make_params(key):
    """PyTorch-style per-layer (W:(in,out), b:(out,)) init in f32."""
    params = []
    dims_list = list(zip(ENC_DIMS[:-1], ENC_DIMS[1:])) + \
                list(zip(DEC_DIMS[:-1], DEC_DIMS[1:]))
    for (din, dout) in dims_list:
        key, kw, kb = jax.random.split(key, 3)
        bound = 1.0 / jnp.sqrt(jnp.float32(din))
        w = jax.random.uniform(kw, (din, dout), jnp.float32, -bound, bound)
        b = jax.random.uniform(kb, (dout,), jnp.float32, -bound, bound)
        params.append((w, b))
    return params


def prepare_kernel_params(params):
    """Fuse the activation-free 64->32->64 bottleneck, place the encoded
    columns at their final lane offset (300:332), pad the last layer to 384
    lanes, cast weights to bf16, pack all biases into one (8, 384) f32 array."""
    (w0, b0), (w1, b1), (w2, b2), (w3, b3), (w4, b4), \
        (w5, b5), (w6, b6), (w7, b7) = params

    # No nonlinearity between encoder L3 (64->32) and decoder L0 (32->64):
    #   enc    = h @ W3 + b3
    #   dec0_z = enc @ W4 + b4 = h @ (W3@W4) + (b3@W4 + b4)
    w34 = w3 @ w4                                        # (64, 64)
    b34 = b3 @ w4 + b4                                   # (64,)
    wf = jnp.zeros((w3.shape[0], OUT_W), jnp.float32)
    wf = wf.at[:, :64].set(w34)                          # dec0 pre-activation
    wf = wf.at[:, ENC_OFF:ENC_OFF + ENC_W].set(w3)       # encoded, final offset
    bfz = jnp.zeros((OUT_W,), jnp.float32)
    bfz = bfz.at[:64].set(b34)
    bfz = bfz.at[ENC_OFF:ENC_OFF + ENC_W].set(b3)

    # Pad last layer (256->300) to 384 lanes for unmasked stores.
    w7p = jnp.zeros((w7.shape[0], OUT_W), jnp.float32).at[:, :DEC_W].set(w7)
    b7p = jnp.zeros((OUT_W,), jnp.float32).at[:DEC_W].set(b7)

    weights_f32 = [w0, w1, w2, wf, w5, w6, w7p]
    biases = [b0, b1, b2, bfz, b5, b6, b7p]

    weights = [w.astype(jnp.bfloat16) for w in weights_f32]

    bias_pack = jnp.zeros((BIAS_ROWS, OUT_W), jnp.float32)
    for i, b in enumerate(biases):
        bias_pack = bias_pack.at[i, :b.shape[0]].set(b)
    return weights, bias_pack


# ---------------------------------------------------------------------------
# Wrapper
# ---------------------------------------------------------------------------
def _choose_tile(B, block_rows):
    """Batch tile: single full block for small batches; two balanced steps for
    medium batches (v7x megacore); block_rows otherwise."""
    if B <= 256 and B <= block_rows:
        return B                                   # single full-array block
    if B <= 2 * block_rows:
        return min(_round_up(pl.cdiv(B, 2), 16), B)  # >= 2 balanced grid steps
    return block_rows


def autoencoder_forward(x, weights, bias_pack, *, block_rows=1024):
    B, D = x.shape
    assert D == D_IN

    TB = _choose_tile(B, block_rows)
    grid = (pl.cdiv(B, TB),)   # ragged batches -> masked partial last block

    def const_spec(arr):  # weights / biases: DMA'd once, stay VMEM-resident
        return pl.BlockSpec(arr.shape, lambda i: (0, 0))

    in_specs = [pl.BlockSpec((TB, D_IN), lambda i: (i, 0))] + \
               [const_spec(w) for w in weights] + [const_spec(bias_pack)]
    out_specs = pl.BlockSpec((TB, OUT_W), lambda i: (i, 0))
    out_shape = jax.ShapeDtypeStruct((B, OUT_W), jnp.bfloat16)

    flops = 2 * B * sum(int(w.shape[0]) * int(w.shape[1]) for w in weights)
    transcendentals = B * (256 + 128 + 64 + 64 + 128 + 256 + OUT_W)
    bytes_accessed = (int(x.size) * 4
                      + sum(int(w.size) * 2 for w in weights)
                      + int(bias_pack.size) * 4
                      + B * OUT_W * 2)

    fn = pl.pallas_call(
        _autoencoder_kernel,
        out_shape=out_shape,
        grid_spec=pltpu.PrefetchScalarGridSpec(
            num_scalar_prefetch=0,
            grid=grid,
            in_specs=in_specs,
            out_specs=out_specs,
        ),
        compiler_params=pltpu.CompilerParams(
            dimension_semantics=("parallel",),
            vmem_limit_bytes=48 * 1024 * 1024),
        cost_estimate=pl.CostEstimate(
            flops=flops,
            transcendentals=transcendentals,
            bytes_accessed=bytes_accessed),
    )
    merged = fn(x, *weights, bias_pack)
    # Slice the two logical outputs out of the merged slab (bf16; cast to f32
    # downstream if a wider latent code is required).
    encoded = merged[:, ENC_OFF:ENC_OFF + ENC_W]
    decoded = merged[:, :DEC_W]
    return encoded, decoded


# ---------------------------------------------------------------------------
# References
# ---------------------------------------------------------------------------
def reference_forward_f32(x, params):
    """Pure-f32 PyTorch-equivalent forward (semantic reference)."""
    h = x
    for i in range(4):
        w, b = params[i]
        h = h @ w + b
        if i < 3:
            h = jnp.tanh(h)
    enc = h
    for i in range(4, 8):
        w, b = params[i]
        h = h @ w + b
        if i < 7:
            h = jnp.tanh(h)
        else:
            h = jax.nn.sigmoid(h)
    return enc, h


def reference_forward_like_kernel(x, weights, bias_pack):
    """Plain-jnp replica of the kernel math (bf16 matmuls/tanh, fused
    bottleneck, merged bf16 output slab)."""
    bf16, f32 = jnp.bfloat16, jnp.float32

    def dense(h, i):
        z = jnp.dot(h, weights[i], preferred_element_type=f32)
        return z + bias_pack[i:i + 1, :LAYER_OUT[i]]

    def act(z):
        return jnp.tanh(z.astype(bf16))

    h = x.astype(bf16)
    h = act(dense(h, 0))
    h = act(dense(h, 1))
    h = act(dense(h, 2))
    fused = dense(h, 3)
    h = act(fused[:, :64])
    h = act(dense(h, 4))
    h = act(dense(h, 5))
    z = dense(h, 6)
    t = jnp.tanh((0.5 * z).astype(bf16)).astype(f32)
    dec = 0.5 * (t + 1.0)
    lane = jnp.arange(OUT_W)[None, :]
    merged = jnp.where(lane < DEC_W, dec, fused).astype(bf16)
    return merged[:, ENC_OFF:ENC_OFF + ENC_W], merged[:, :DEC_W]


# ---------------------------------------------------------------------------
if __name__ == "__main__":
    key = jax.random.PRNGKey(0)
    key, kx, kp = jax.random.split(key, 3)

    B = 8
    x = jax.random.uniform(kx, (B, D_IN), jnp.float32)
    params = make_params(kp)
    weights, bias_pack = prepare_kernel_params(params)

    encoded, decoded = autoencoder_forward(x, weights, bias_pack)
    jax.block_until_ready((encoded, decoded))

    assert encoded.shape == (B, ENC_W) and decoded.shape == (B, DEC_W)

    # Tight check against a replica of the kernel's exact (bf16) math.
    enc_k, dec_k = reference_forward_like_kernel(x, weights, bias_pack)
    assert jnp.allclose(encoded.astype(jnp.float32), enc_k.astype(jnp.float32),
                        atol=2e-2, rtol=2e-2)
    assert jnp.allclose(decoded.astype(jnp.float32), dec_k.astype(jnp.float32),
                        atol=2e-2, rtol=2e-2)

    # Looser check against the pure-f32 PyTorch-equivalent forward
    # (bf16 MXU operands + bf16 output stores require loosened tolerances).
    enc_f, dec_f = reference_forward_f32(x, params)
    assert jnp.allclose(encoded.astype(jnp.float32), enc_f, atol=6e-2, rtol=6e-2)
    assert jnp.allclose(decoded.astype(jnp.float32), dec_f, atol=6e-2, rtol=6e-2)

    print("KERNEL_OK")
</pallas_src>

<mosaic_0001>
module attributes {stable_mosaic.version = 11 : i64} {
  func.func @_autoencoder_kernel(%arg0: i32, %arg1: memref<8x300xf32, #tpu.memory_space<vmem>>, %arg2: memref<300x256xbf16, #tpu.memory_space<vmem>>, %arg3: memref<256x128xbf16, #tpu.memory_space<vmem>>, %arg4: memref<128x64xbf16, #tpu.memory_space<vmem>>, %arg5: memref<64x384xbf16, #tpu.memory_space<vmem>>, %arg6: memref<64x128xbf16, #tpu.memory_space<vmem>>, %arg7: memref<128x256xbf16, #tpu.memory_space<vmem>>, %arg8: memref<256x384xbf16, #tpu.memory_space<vmem>>, %arg9: memref<8x384xf32, #tpu.memory_space<vmem>>, %arg10: memref<8x384xbf16, #tpu.memory_space<vmem>>) attributes {dimension_semantics = [#tpu.dimension_semantics<parallel>], iteration_bounds = array<i64: 1>, scalar_prefetch = 0 : i64, scratch_operands = 0 : i64, tpu.core_type = #tpu.core_type<tc>, window_params = [{transform_indices = @transform_0, window_bounds = array<i64: 8, 300>}, {pipeline_mode = #tpu.pipeline_mode<synchronous>, transform_indices = @transform_1, window_bounds = array<i64: 300, 256>}, {pipeline_mode = #tpu.pipeline_mode<synchronous>, transform_indices = @transform_2, window_bounds = array<i64: 256, 128>}, {pipeline_mode = #tpu.pipeline_mode<synchronous>, transform_indices = @transform_3, window_bounds = array<i64: 128, 64>}, {pipeline_mode = #tpu.pipeline_mode<synchronous>, transform_indices = @transform_4, window_bounds = array<i64: 64, 384>}, {pipeline_mode = #tpu.pipeline_mode<synchronous>, transform_indices = @transform_5, window_bounds = array<i64: 64, 128>}, {pipeline_mode = #tpu.pipeline_mode<synchronous>, transform_indices = @transform_6, window_bounds = array<i64: 128, 256>}, {pipeline_mode = #tpu.pipeline_mode<synchronous>, transform_indices = @transform_7, window_bounds = array<i64: 256, 384>}, {pipeline_mode = #tpu.pipeline_mode<synchronous>, transform_indices = @transform_8, window_bounds = array<i64: 8, 384>}, {transform_indices = @transform_9, window_bounds = array<i64: 8, 384>}]} {
    %c0 = arith.constant 0 : index
    %c0_0 = arith.constant 0 : index
    %0 = vector.load %arg9[%c0, %c0_0] : memref<8x384xf32, #tpu.memory_space<vmem>>, vector<8x384xf32>
    %c0_1 = arith.constant 0 : index
    %c0_2 = arith.constant 0 : index
    %1 = vector.load %arg1[%c0_1, %c0_2] : memref<8x300xf32, #tpu.memory_space<vmem>>, vector<8x300xf32>
    %2 = arith.truncf %1 : vector<8x300xf32> to vector<8x300xbf16>
    %c0_3 = arith.constant 0 : index
    %c0_4 = arith.constant 0 : index
    %3 = vector.load %arg2[%c0_3, %c0_4] : memref<300x256xbf16, #tpu.memory_space<vmem>>, vector<300x256xbf16>
    %cst = arith.constant dense<0.000000e+00> : vector<8x256xf32>
    %4 = tpu.matmul %2, %3, %cst {dimension_numbers = #tpu.dot_dimension_numbers<[1], [0], [0], [1], [0, 0, 1, 1], [], []>} : vector<8x300xbf16>, vector<300x256xbf16>, vector<8x256xf32> -> vector<8x256xf32>
    %5 = vector.extract_strided_slice %0 {offsets = [0, 0], sizes = [1, 256], strides = [1, 1]} : vector<8x384xf32> to vector<1x256xf32>
    %6 = vector.broadcast %5 : vector<1x256xf32> to vector<8x256xf32>
    %7 = arith.addf %4, %6 : vector<8x256xf32>
    %8 = arith.truncf %7 : vector<8x256xf32> to vector<8x256xbf16>
    %9 = math.tanh %8 : vector<8x256xbf16>
    %c0_5 = arith.constant 0 : index
    %c0_6 = arith.constant 0 : index
    %10 = vector.load %arg3[%c0_5, %c0_6] : memref<256x128xbf16, #tpu.memory_space<vmem>>, vector<256x128xbf16>
    %cst_7 = arith.constant dense<0.000000e+00> : vector<8x128xf32>
    %11 = tpu.matmul %9, %10, %cst_7 {dimension_numbers = #tpu.dot_dimension_numbers<[1], [0], [0], [1], [0, 0, 1, 1], [], []>} : vector<8x256xbf16>, vector<256x128xbf16>, vector<8x128xf32> -> vector<8x128xf32>
    %12 = vector.extract_strided_slice %0 {offsets = [1, 0], sizes = [1, 128], strides = [1, 1]} : vector<8x384xf32> to vector<1x128xf32>
    %13 = vector.broadcast %12 : vector<1x128xf32> to vector<8x128xf32>
    %14 = arith.addf %11, %13 : vector<8x128xf32>
    %15 = arith.truncf %14 : vector<8x128xf32> to vector<8x128xbf16>
    %16 = math.tanh %15 : vector<8x128xbf16>
    %c0_8 = arith.constant 0 : index
    %c0_9 = arith.constant 0 : index
    %17 = vector.load %arg4[%c0_8, %c0_9] : memref<128x64xbf16, #tpu.memory_space<vmem>>, vector<128x64xbf16>
    %cst_10 = arith.constant dense<0.000000e+00> : vector<8x64xf32>
    %18 = tpu.matmul %16, %17, %cst_10 {dimension_numbers = #tpu.dot_dimension_numbers<[1], [0], [0], [1], [0, 0, 1, 1], [], []>} : vector<8x128xbf16>, vector<128x64xbf16>, vector<8x64xf32> -> vector<8x64xf32>
    %19 = vector.extract_strided_slice %0 {offsets = [2, 0], sizes = [1, 64], strides = [1, 1]} : vector<8x384xf32> to vector<1x64xf32>
    %20 = vector.broadcast %19 : vector<1x64xf32> to vector<8x64xf32>
    %21 = arith.addf %18, %20 : vector<8x64xf32>
    %22 = arith.truncf %21 : vector<8x64xf32> to vector<8x64xbf16>
    %23 = math.tanh %22 : vector<8x64xbf16>
    %c0_11 = arith.constant 0 : index
    %c0_12 = arith.constant 0 : index
    %24 = vector.load %arg5[%c0_11, %c0_12] : memref<64x384xbf16, #tpu.memory_space<vmem>>, vector<64x384xbf16>
    %cst_13 = arith.constant dense<0.000000e+00> : vector<8x384xf32>
    %25 = tpu.matmul %23, %24, %cst_13 {dimension_numbers = #tpu.dot_dimension_numbers<[1], [0], [0], [1], [0, 0, 1, 1], [], []>} : vector<8x64xbf16>, vector<64x384xbf16>, vector<8x384xf32> -> vector<8x384xf32>
    %26 = vector.extract_strided_slice %0 {offsets = [3, 0], sizes = [1, 384], strides = [1, 1]} : vector<8x384xf32> to vector<1x384xf32>
    %27 = vector.broadcast %26 : vector<1x384xf32> to vector<8x384xf32>
    %28 = arith.addf %25, %27 : vector<8x384xf32>
    %29 = vector.extract_strided_slice %28 {offsets = [0, 0], sizes = [8, 64], strides = [1, 1]} : vector<8x384xf32> to vector<8x64xf32>
    %30 = arith.truncf %29 : vector<8x64xf32> to vector<8x64xbf16>
    %31 = math.tanh %30 : vector<8x64xbf16>
    %c0_14 = arith.constant 0 : index
    %c0_15 = arith.constant 0 : index
    %32 = vector.load %arg6[%c0_14, %c0_15] : memref<64x128xbf16, #tpu.memory_space<vmem>>, vector<64x128xbf16>
    %cst_16 = arith.constant dense<0.000000e+00> : vector<8x128xf32>
    %33 = tpu.matmul %31, %32, %cst_16 {dimension_numbers = #tpu.dot_dimension_numbers<[1], [0], [0], [1], [0, 0, 1, 1], [], []>} : vector<8x64xbf16>, vector<64x128xbf16>, vector<8x128xf32> -> vector<8x128xf32>
    %34 = vector.extract_strided_slice %0 {offsets = [4, 0], sizes = [1, 128], strides = [1, 1]} : vector<8x384xf32> to vector<1x128xf32>
    %35 = vector.broadcast %34 : vector<1x128xf32> to vector<8x128xf32>
    %36 = arith.addf %33, %35 : vector<8x128xf32>
    %37 = arith.truncf %36 : vector<8x128xf32> to vector<8x128xbf16>
    %38 = math.tanh %37 : vector<8x128xbf16>
    %c0_17 = arith.constant 0 : index
    %c0_18 = arith.constant 0 : index
    %39 = vector.load %arg7[%c0_17, %c0_18] : memref<128x256xbf16, #tpu.memory_space<vmem>>, vector<128x256xbf16>
    %cst_19 = arith.constant dense<0.000000e+00> : vector<8x256xf32>
    %40 = tpu.matmul %38, %39, %cst_19 {dimension_numbers = #tpu.dot_dimension_numbers<[1], [0], [0], [1], [0, 0, 1, 1], [], []>} : vector<8x128xbf16>, vector<128x256xbf16>, vector<8x256xf32> -> vector<8x256xf32>
    %41 = vector.extract_strided_slice %0 {offsets = [5, 0], sizes = [1, 256], strides = [1, 1]} : vector<8x384xf32> to vector<1x256xf32>
    %42 = vector.broadcast %41 : vector<1x256xf32> to vector<8x256xf32>
    %43 = arith.addf %40, %42 : vector<8x256xf32>
    %44 = arith.truncf %43 : vector<8x256xf32> to vector<8x256xbf16>
    %45 = math.tanh %44 : vector<8x256xbf16>
    %c0_20 = arith.constant 0 : index
    %c0_21 = arith.constant 0 : index
    %46 = vector.load %arg8[%c0_20, %c0_21] : memref<256x384xbf16, #tpu.memory_space<vmem>>, vector<256x384xbf16>
    %cst_22 = arith.constant dense<0.000000e+00> : vector<8x384xf32>
    %47 = tpu.matmul %45, %46, %cst_22 {dimension_numbers = #tpu.dot_dimension_numbers<[1], [0], [0], [1], [0, 0, 1, 1], [], []>} : vector<8x256xbf16>, vector<256x384xbf16>, vector<8x384xf32> -> vector<8x384xf32>
    %48 = vector.extract_strided_slice %0 {offsets = [6, 0], sizes = [1, 384], strides = [1, 1]} : vector<8x384xf32> to vector<1x384xf32>
    %49 = vector.broadcast %48 : vector<1x384xf32> to vector<8x384xf32>
    %50 = arith.addf %47, %49 : vector<8x384xf32>
    %cst_23 = arith.constant 5.000000e-01 : f32
    %51 = vector.broadcast %cst_23 : f32 to vector<8x384xf32>
    %52 = arith.mulf %51, %50 : vector<8x384xf32>
    %53 = arith.truncf %52 : vector<8x384xf32> to vector<8x384xbf16>
    %54 = math.tanh %53 : vector<8x384xbf16>
    %55 = arith.extf %54 : vector<8x384xbf16> to vector<8x384xf32>
    %cst_24 = arith.constant 1.000000e+00 : f32
    %56 = vector.broadcast %cst_24 : f32 to vector<8x384xf32>
    %57 = arith.addf %55, %56 : vector<8x384xf32>
    %cst_25 = arith.constant 5.000000e-01 : f32
    %58 = vector.broadcast %cst_25 : f32 to vector<8x384xf32>
    %59 = arith.mulf %58, %57 : vector<8x384xf32>
    %60 = tpu.iota {dimensions = array<i32: 1>} : vector<1x384xi32>
    %c300_i32 = arith.constant 300 : i32
    %61 = vector.broadcast %c300_i32 : i32 to vector<1x384xi32>
    %62 = arith.cmpi slt, %60, %61 : vector<1x384xi32>
    %63 = vector.shape_cast %62 : vector<1x384xi1> to vector<1x384xi1>
    %64 = vector.broadcast %63 : vector<1x384xi1> to vector<8x384xi1>
    %65 = arith.select %64, %59, %28 : vector<8x384xi1>, vector<8x384xf32>
    %66 = arith.truncf %65 : vector<8x384xf32> to vector<8x384xbf16>
    %c0_26 = arith.constant 0 : index
    %c0_27 = arith.constant 0 : index
    %67 = vector.load %arg10[%c0_26, %c0_27] : memref<8x384xbf16, #tpu.memory_space<vmem>>, vector<8x384xbf16>
    tpu.vector_store %arg10[%c0_26, %c0_27], %66 {strides = array<i32>} : memref<8x384xbf16, #tpu.memory_space<vmem>>, vector<8x384xbf16>,
    return
  }
  func.func @transform_0(%arg0: i32) -> (i32, i32) {
    %c0_i32 = arith.constant 0 : i32
    %c0_i32_0 = arith.constant 0 : i32
    return %arg0, %c0_i32 : i32, i32
  }
  func.func @transform_1(%arg0: i32) -> (i32, i32) {
    %c0_i32 = arith.constant 0 : i32
    %c0_i32_0 = arith.constant 0 : i32
    %c0_i32_1 = arith.constant 0 : i32
    return %c0_i32, %c0_i32_0 : i32, i32
  }
  func.func @transform_2(%arg0: i32) -> (i32, i32) {
    %c0_i32 = arith.constant 0 : i32
    %c0_i32_0 = arith.constant 0 : i32
    %c0_i32_1 = arith.constant 0 : i32
    return %c0_i32, %c0_i32_0 : i32, i32
  }
  func.func @transform_3(%arg0: i32) -> (i32, i32) {
    %c0_i32 = arith.constant 0 : i32
    %c0_i32_0 = arith.constant 0 : i32
    %c0_i32_1 = arith.constant 0 : i32
    return %c0_i32, %c0_i32_0 : i32, i32
  }
  func.func @transform_4(%arg0: i32) -> (i32, i32) {
    %c0_i32 = arith.constant 0 : i32
    %c0_i32_0 = arith.constant 0 : i32
    %c0_i32_1 = arith.constant 0 : i32
    return %c0_i32, %c0_i32_0 : i32, i32
  }
  func.func @transform_5(%arg0: i32) -> (i32, i32) {
    %c0_i32 = arith.constant 0 : i32
    %c0_i32_0 = arith.constant 0 : i32
    %c0_i32_1 = arith.constant 0 : i32
    return %c0_i32, %c0_i32_0 : i32, i32
  }
  func.func @transform_6(%arg0: i32) -> (i32, i32) {
    %c0_i32 = arith.constant 0 : i32
    %c0_i32_0 = arith.constant 0 : i32
    %c0_i32_1 = arith.constant 0 : i32
    return %c0_i32, %c0_i32_0 : i32, i32
  }
  func.func @transform_7(%arg0: i32) -> (i32, i32) {
    %c0_i32 = arith.constant 0 : i32
    %c0_i32_0 = arith.constant 0 : i32
    %c0_i32_1 = arith.constant 0 : i32
    return %c0_i32, %c0_i32_0 : i32, i32
  }
  func.func @transform_8(%arg0: i32) -> (i32, i32) {
    %c0_i32 = arith.constant 0 : i32
    %c0_i32_0 = arith.constant 0 : i32
    %c0_i32_1 = arith.constant 0 : i32
    return %c0_i32, %c0_i32_0 : i32, i32
  }
  func.func @transform_9(%arg0: i32) -> (i32, i32) {
    %c0_i32 = arith.constant 0 : i32
    %c0_i32_0 = arith.constant 0 : i32
    return %arg0, %c0_i32 : i32, i32
  }
}

</mosaic_0001>

<llo_original>
// kernel: tpu_custom_call.1
$region0: #{tpu_custom_call.1}
  #allocation0 [shape = 'u32[]', space=smem, size = 0x4, offset = 0x4, fixed_abs, tag = 'smem constant byte address 0x4 - core index']
  #allocation1 [shape = 'u32[144,128]{1,0:T(1,128)}', space=vmem, size = 0x12000, scoped, tag = 'internal scratch']
  %s0 = inlined_call_operand.hbm [shape: f32[8,300], index: 0, kind: input, shape index: {}]
  %s1 = inlined_call_operand.hbm [shape: bf16[300,256], index: 1, kind: input, shape index: {}]
  %s2 = inlined_call_operand.hbm [shape: bf16[256,128], index: 2, kind: input, shape index: {}]
  %s3 = inlined_call_operand.vmem [shape: bf16[128,64], index: 3, kind: input, shape index: {}]
  %s4 = inlined_call_operand.vmem [shape: bf16[64,384], index: 4, kind: input, shape index: {}]
  %s5 = inlined_call_operand.hbm [shape: bf16[64,128], index: 5, kind: input, shape index: {}]
  %s6 = inlined_call_operand.hbm [shape: bf16[128,256], index: 6, kind: input, shape index: {}]
  %s7 = inlined_call_operand.hbm [shape: bf16[256,384], index: 7, kind: input, shape index: {}]
  %s8 = inlined_call_operand.vmem [shape: f32[8,384], index: 8, kind: input, shape index: {}]
  %s9 = inlined_call_operand.hbm [shape: bf16[8,384], index: 9, kind: output, shape index: {}]
  %s10 = sld [smem:[#allocation0]]
  $region70: #{tpu_custom_call.1} parent=0
    _
  %s12 = ssub.s32 1, %s10
  %s13 = scalar_select 0, %s12, %s10
  $region1: #{tpu_custom_call.1} parent=0
    #allocation2 [shape = 'u8[12288]{0}', space=vmem, size = 0x3000, scoped, tag = 'input window, operand 0, single buffered']
    #allocation3 [shape = 's32[1]{0}', space=sflag, size = 0x4, scoped, tag = 'scoped memory for tpu_custom_call.1']
    #allocation4 [shape = 's32[1]{0}', space=sflag, size = 0x4, scoped, tag = 'scoped memory for tpu_custom_call.1']
    #allocation5 [shape = 'u8[155648]{0}', space=vmem, size = 0x26000, scoped, tag = 'input window, operand 1, single buffered']
    #allocation6 [shape = 's32[1]{0}', space=sflag, size = 0x4, scoped, tag = 'scoped memory for tpu_custom_call.1']
    #allocation7 [shape = 'u8[65536]{0}', space=vmem, size = 0x10000, scoped, tag = 'input window, operand 2, single buffered']
    #allocation8 [shape = 'u8[16384]{0}', space=vmem, size = 0x4000, scoped, tag = 'input window, operand 5, single buffered']
    #allocation9 [shape = 's32[1]{0}', space=sflag, size = 0x4, scoped, tag = 'scoped memory for tpu_custom_call.1']
    #allocation10 [shape = 'u8[65536]{0}', space=vmem, size = 0x10000, scoped, tag = 'input window, operand 6, single buffered']
    #allocation11 [shape = 'u8[196608]{0}', space=vmem, size = 0x30000, scoped, tag = 'input window, operand 7, single buffered']
    #allocation12 [shape = 's32[1]{0}', space=sflag, size = 0x4, scoped, tag = 'scoped memory for tpu_custom_call.1']
    #allocation13 [shape = 'u8[6144]{0}', space=vmem, size = 0x1800, scoped, tag = 'output window, operand 0, single buffered']
    %14 = vsyncpa [#allocation3], 0
    %15 = vsyncpa [#allocation6], 0
    %16 = vsyncpa [#allocation9], 0
    %17 = vsyncpa [#allocation12], 0
    %18 = vsyncpa [#allocation4], 0
    // Predicated region
    $region2: #{tpu_custom_call.1} parent=1 // pred_check
      _
    $region3: #{tpu_custom_call.1} parent=1 // pred_check_branch
      %20 = sbr.rel (0) target = $region5
    $region4: #{tpu_custom_call.1} parent=1 // pred_region
      %s22 = ssub.s32 384, 384
      %23 = vsyncadd [#allocation3], %s22
      %s25 = sshll.u32 [#allocation2], 4
      %s26 = int_to_ptr.vmem [resolvable:$true] %s25
      %28 = dma.hbm_to_vmem [thread:$0]  %s0, 384, %s26, [#allocation3]
    $region5: #{tpu_custom_call.1} parent=1 // pred_fallthru
      _
    // Predicated region
    $region6: #{tpu_custom_call.1} parent=1 // pred_check
      _
    $region7: #{tpu_custom_call.1} parent=1 // pred_check_branch
      %30 = sbr.rel (0) target = $region9
    $region8: #{tpu_custom_call.1} parent=1 // pred_region
      %s32 = ssub.s32 4864, 4864
      %33 = vsyncadd [#allocation6], %s32
      %s34 = sshll.u32 [#allocation5], 4
      %s35 = int_to_ptr.vmem [resolvable:$true] %s34
      %40 = dma.hbm_to_vmem [thread:$0]  %s1, 4864, %s35, [#allocation6], 128, 128, 8
    $region9: #{tpu_custom_call.1} parent=1 // pred_fallthru
      _
    // Predicated region
    $region10: #{tpu_custom_call.1} parent=1 // pred_check
      _
    $region11: #{tpu_custom_call.1} parent=1 // pred_check_branch
      %42 = sbr.rel (0) target = $region13
    $region12: #{tpu_custom_call.1} parent=1 // pred_region
      %s44 = ssub.s32 2048, 2048
      %45 = vsyncadd [#allocation6], %s44
      %s46 = sshll.u32 [#allocation7], 4
      %s47 = int_to_ptr.vmem [resolvable:$true] %s46
      %52 = dma.hbm_to_vmem [thread:$0]  %s2, 2048, %s47, [#allocation6], 64, 64, 4
    $region13: #{tpu_custom_call.1} parent=1 // pred_fallthru
      _
    // Predicated region
    $region14: #{tpu_custom_call.1} parent=1 // pred_check
      _
    $region15: #{tpu_custom_call.1} parent=1 // pred_check_branch
      %54 = sbr.rel (0) target = $region17
    $region16: #{tpu_custom_call.1} parent=1 // pred_region
      _
    $region17: #{tpu_custom_call.1} parent=1 // pred_fallthru
      _
    // Predicated region
    $region18: #{tpu_custom_call.1} parent=1 // pred_check
      _
    $region19: #{tpu_custom_call.1} parent=1 // pred_check_branch
      %56 = sbr.rel (0) target = $region21
    $region20: #{tpu_custom_call.1} parent=1 // pred_region
      _
    $region21: #{tpu_custom_call.1} parent=1 // pred_fallthru
      _
    // Predicated region
    $region22: #{tpu_custom_call.1} parent=1 // pred_check
      _
    $region23: #{tpu_custom_call.1} parent=1 // pred_check_branch
      %58 = sbr.rel (0) target = $region25
    $region24: #{tpu_custom_call.1} parent=1 // pred_region
      %s60 = ssub.s32 512, 512
      %61 = vsyncadd [#allocation9], %s60
      %s62 = sshll.u32 [#allocation8], 4
      %s63 = int_to_ptr.vmem [resolvable:$true] %s62
      %68 = dma.hbm_to_vmem [thread:$0]  %s5, 512, %s63, [#allocation9], 64, 64, 4
    $region25: #{tpu_custom_call.1} parent=1 // pred_fallthru
      _
    // Predicated region
    $region26: #{tpu_custom_call.1} parent=1 // pred_check
      _
    $region27: #{tpu_custom_call.1} parent=1 // pred_check_branch
      %70 = sbr.rel (0) target = $region29
    $region28: #{tpu_custom_call.1} parent=1 // pred_region
      %s72 = ssub.s32 2048, 2048
      %73 = vsyncadd [#allocation9], %s72
      %s74 = sshll.u32 [#allocation10], 4
      %s75 = int_to_ptr.vmem [resolvable:$true] %s74
      %80 = dma.hbm_to_vmem [thread:$0]  %s6, 2048, %s75, [#allocation9], 128, 128, 8
    $region29: #{tpu_custom_call.1} parent=1 // pred_fallthru
      _
    // Predicated region
    $region30: #{tpu_custom_call.1} parent=1 // pred_check
      _
    $region31: #{tpu_custom_call.1} parent=1 // pred_check_branch
      %82 = sbr.rel (0) target = $region33
    $region32: #{tpu_custom_call.1} parent=1 // pred_region
      %s84 = ssub.s32 6144, 6144
      %85 = vsyncadd [#allocation12], %s84
      %s86 = sshll.u32 [#allocation11], 4
      %s87 = int_to_ptr.vmem [resolvable:$true] %s86
      %92 = dma.hbm_to_vmem [thread:$0]  %s7, 6144, %s87, [#allocation12], 192, 192, 12
    $region33: #{tpu_custom_call.1} parent=1 // pred_fallthru
      _
    // Predicated region
    $region34: #{tpu_custom_call.1} parent=1 // pred_check
      _
    $region35: #{tpu_custom_call.1} parent=1 // pred_check_branch
      %94 = sbr.rel (0) target = $region37
    $region36: #{tpu_custom_call.1} parent=1 // pred_region
      _
    $region37: #{tpu_custom_call.1} parent=1 // pred_fallthru
      _
    // Predicated region
    $region38: #{tpu_custom_call.1} parent=1 // pred_check
      _
    $region39: #{tpu_custom_call.1} parent=1 // pred_check_branch
      %96 = sbr.rel (0) target = $region41
    $region40: #{tpu_custom_call.1} parent=1 // pred_region
      %97 = dma.done [#allocation3], 384
    $region41: #{tpu_custom_call.1} parent=1 // pred_fallthru
      _
    // Predicated region
    $region42: #{tpu_custom_call.1} parent=1 // pred_check
      _
    $region43: #{tpu_custom_call.1} parent=1 // pred_check_branch
      %99 = sbr.rel (0) target = $region45
    $region44: #{tpu_custom_call.1} parent=1 // pred_region
      %100 = dma.done [#allocation6], 4864
    $region45: #{tpu_custom_call.1} parent=1 // pred_fallthru
      _
    // Predicated region
    $region46: #{tpu_custom_call.1} parent=1 // pred_check
      _
    $region47: #{tpu_custom_call.1} parent=1 // pred_check_branch
      %102 = sbr.rel (0) target = $region49
    $region48: #{tpu_custom_call.1} parent=1 // pred_region
      %103 = dma.done [#allocation6], 2048
    $region49: #{tpu_custom_call.1} parent=1 // pred_fallthru
      _
    // Predicated region
    $region50: #{tpu_custom_call.1} parent=1 // pred_check
      _
    $region51: #{tpu_custom_call.1} parent=1 // pred_check_branch
      %105 = sbr.rel (0) target = $region53
    $region52: #{tpu_custom_call.1} parent=1 // pred_region
      %106 = dma.done [#allocation9], 512
    $region53: #{tpu_custom_call.1} parent=1 // pred_fallthru
      _
    // Predicated region
    $region54: #{tpu_custom_call.1} parent=1 // pred_check
      _
    $region55: #{tpu_custom_call.1} parent=1 // pred_check_branch
      %108 = sbr.rel (0) target = $region57
    $region56: #{tpu_custom_call.1} parent=1 // pred_region
      %109 = dma.done [#allocation9], 2048
    $region57: #{tpu_custom_call.1} parent=1 // pred_fallthru
      _
    // Predicated region
    $region58: #{tpu_custom_call.1} parent=1 // pred_check
      _
    $region59: #{tpu_custom_call.1} parent=1 // pred_check_branch
      %111 = sbr.rel (0) target = $region61
    $region60: #{tpu_custom_call.1} parent=1 // pred_region
      %112 = dma.done [#allocation12], 6144
    $region61: #{tpu_custom_call.1} parent=1 // pred_fallthru
      _
    %v114 = vld [vmem:[%s8] sm:$0xff]
    %v115 = vld [vmem:[%s8 + $0x8] sm:$0xff]
    %v116 = vld [vmem:[%s8 + $0x10] sm:$0xff]
    %v117 = vld [vmem:[#allocation2] sm:$0xff]
    %v118 = vld [vmem:[#allocation2 + $0x8] sm:$0xff]
    %v119 = vld [vmem:[#allocation2 + $0x10] sm:$0xff]
    %v120 = vpack.c.bf16 %v117, %v117
    %v121 = vpack.c.bf16 %v118, %v118
    %v122 = vpack.c.bf16 %v119, %v119
    %v123 = vld [vmem:[#allocation5] sm:$0xff]
    %v124 = vld [vmem:[#allocation5 + $0x8] sm:$0xff]
    %v125 = vld [vmem:[#allocation5 + $0x10] sm:$0xff]
    %v126 = vld [vmem:[#allocation5 + $0x18] sm:$0xff]
    %v127 = vld [vmem:[#allocation5 + $0x20] sm:$0xff]
    %v128 = vld [vmem:[#allocation5 + $0x28] sm:$0xff]
    %v129 = vld [vmem:[#allocation5 + $0x30] sm:$0xff]
    %v130 = vld [vmem:[#allocation5 + $0x38] sm:$0xff]
    %v131 = vld [vmem:[#allocation5 + $0x40] sm:$0xff]
    %v132 = vld [vmem:[#allocation5 + $0x48] sm:$0xff]
    %v133 = vld [vmem:[#allocation5 + $0x50] sm:$0xff]
    %v134 = vld [vmem:[#allocation5 + $0x58] sm:$0xff]
    %v135 = vld [vmem:[#allocation5 + $0x60] sm:$0xff]
    %v136 = vld [vmem:[#allocation5 + $0x68] sm:$0xff]
    %v137 = vld [vmem:[#allocation5 + $0x70] sm:$0xff]
    %v138 = vld [vmem:[#allocation5 + $0x78] sm:$0xff]
    %v139 = vld [vmem:[#allocation5 + $0x80] sm:$0xff]
    %v140 = vld [vmem:[#allocation5 + $0x88] sm:$0xff]
    %v141 = vld [vmem:[#allocation5 + $0x90] sm:$0xff]
    %v142 = vld [vmem:[#allocation5 + $0x98] sm:$0xff]
    %v143 = vld [vmem:[#allocation5 + $0xa0] sm:$0xff]
    %v144 = vld [vmem:[#allocation5 + $0xa8] sm:$0xff]
    %v145 = vld [vmem:[#allocation5 + $0xb0] sm:$0xff]
    %v146 = vld [vmem:[#allocation5 + $0xb8] sm:$0xff]
    %v147 = vld [vmem:[#allocation5 + $0xc0] sm:$0xff]
    %v148 = vld [vmem:[#allocation5 + $0xc8] sm:$0xff]
    %v149 = vld [vmem:[#allocation5 + $0xd0] sm:$0xff]
    %v150 = vld [vmem:[#allocation5 + $0xd8] sm:$0xff]
    %v151 = vld [vmem:[#allocation5 + $0xe0] sm:$0xff]
    %v152 = vld [vmem:[#allocation5 + $0xe8] sm:$0xff]
    %v153 = vld [vmem:[#allocation5 + $0xf0] sm:$0xff]
    %v154 = vld [vmem:[#allocation5 + $0xf8] sm:$0xff]
    %v155 = vld [vmem:[#allocation5 + $0x100] sm:$0xff]
    %v156 = vld [vmem:[#allocation5 + $0x108] sm:$0xff]
    %v157 = vld [vmem:[#allocation5 + $0x110] sm:$0xff]
    %v158 = vld [vmem:[#allocation5 + $0x118] sm:$0xff]
    %v159 = vld [vmem:[#allocation5 + $0x120] sm:$0xff]
    %v160 = vld [vmem:[#allocation5 + $0x128] sm:$0x33]
    %v161 = vlaneseq
    %v162 = vshrl.u32 %v161, 7
    %v163 = vsub.s32 0, %v162
    %v164 = vrot.slane %v114, %v163
    %v165 = vlaneseq
    %v166 = vshrl.u32 %v165, 7
    %v167 = vsub.s32 0, %v166
    %v168 = vrot.slane %v115, %v167
    %v207 = vunpack.c.l.b16 %v123
    %v208 = vunpack.c.h.b16 %v123
    %v209 = vunpack.c.l.b16 %v124
    %v210 = vunpack.c.h.b16 %v124
    %v211 = vunpack.c.l.b16 %v125
    %v212 = vunpack.c.h.b16 %v125
    %v213 = vunpack.c.l.b16 %v126
    %v214 = vunpack.c.h.b16 %v126
    %v215 = vunpack.c.l.b16 %v127
    %v216 = vunpack.c.h.b16 %v127
    %v217 = vunpack.c.l.b16 %v128
    %v218 = vunpack.c.h.b16 %v128
    %v219 = vunpack.c.l.b16 %v129
    %v220 = vunpack.c.h.b16 %v129
    %v221 = vunpack.c.l.b16 %v130
    %v222 = vunpack.c.h.b16 %v130
    %v223 = vunpack.c.l.b16 %v131
    %v224 = vunpack.c.h.b16 %v131
    %v225 = vunpack.c.l.b16 %v132
    %v226 = vunpack.c.h.b16 %v132
    %v227 = vunpack.c.l.b16 %v133
    %v228 = vunpack.c.h.b16 %v133
    %v229 = vunpack.c.l.b16 %v134
    %v230 = vunpack.c.h.b16 %v134
    %v231 = vunpack.c.l.b16 %v135
    %v232 = vunpack.c.h.b16 %v135
    %v233 = vunpack.c.l.b16 %v136
    %v234 = vunpack.c.h.b16 %v136
    %v235 = vunpack.c.l.b16 %v137
    %v236 = vunpack.c.h.b16 %v137
    %v237 = vunpack.c.l.b16 %v138
    %v238 = vunpack.c.h.b16 %v138
    %v239 = vunpack.c.l.b16 %v139
    %v240 = vunpack.c.h.b16 %v139
    %v241 = vunpack.c.l.b16 %v140
    %v242 = vunpack.c.h.b16 %v140
    %v243 = vunpack.c.l.b16 %v141
    %v244 = vunpack.c.h.b16 %v141
    %v245 = vunpack.c.l.b16 %v142
    %v246 = vunpack.c.h.b16 %v142
    %v247 = vunpack.c.l.b16 %v143
    %v248 = vunpack.c.h.b16 %v143
    %v249 = vunpack.c.l.b16 %v144
    %v250 = vunpack.c.h.b16 %v144
    %v251 = vunpack.c.l.b16 %v145
    %v252 = vunpack.c.h.b16 %v145
    %v253 = vunpack.c.l.b16 %v146
    %v254 = vunpack.c.h.b16 %v146
    %v255 = vunpack.c.l.b16 %v147
    %v256 = vunpack.c.h.b16 %v147
    %v257 = vunpack.c.l.b16 %v148
    %v258 = vunpack.c.h.b16 %v148
    %v259 = vunpack.c.l.b16 %v149
    %v260 = vunpack.c.h.b16 %v149
    %v261 = vunpack.c.l.b16 %v150
    %v262 = vunpack.c.h.b16 %v150
    %v263 = vunpack.c.l.b16 %v151
    %v264 = vunpack.c.h.b16 %v151
    %v265 = vunpack.c.l.b16 %v152
    %v266 = vunpack.c.h.b16 %v152
    %v267 = vunpack.c.l.b16 %v153
    %v268 = vunpack.c.h.b16 %v153
    %v269 = vunpack.c.l.b16 %v154
    %v270 = vunpack.c.h.b16 %v154
    %v271 = vunpack.c.l.b16 %v155
    %v272 = vunpack.c.h.b16 %v155
    %v273 = vunpack.c.l.b16 %v156
    %v274 = vunpack.c.h.b16 %v156
    %v275 = vunpack.c.l.b16 %v157
    %v276 = vunpack.c.h.b16 %v157
    %v277 = vunpack.c.l.b16 %v158
    %v278 = vunpack.c.h.b16 %v158
    %v279 = vunpack.c.l.b16 %v159
    %v280 = vunpack.c.h.b16 %v159
    %v281 = vunpack.c.l.b16 %v160
    %v282 = vunpack.c.h.b16 %v160
    %v283 = vpack.c.b16 %v209, %v207
    %v284 = vpack.c.b16 %v210, %v208
    %v285 = vpack.c.b16 %v213, %v211
    %v286 = vpack.c.b16 %v214, %v212
    %v287 = vpack.c.b16 %v217, %v215
    %v288 = vpack.c.b16 %v218, %v216
    %v289 = vpack.c.b16 %v221, %v219
    %v290 = vpack.c.b16 %v222, %v220
    %v291 = vpack.c.b16 %v225, %v223
    %v292 = vpack.c.b16 %v226, %v224
    %v293 = vpack.c.b16 %v229, %v227
    %v294 = vpack.c.b16 %v230, %v228
    %v295 = vpack.c.b16 %v233, %v231
    %v296 = vpack.c.b16 %v234, %v232
    %v297 = vpack.c.b16 %v237, %v235
    %v298 = vpack.c.b16 %v238, %v236
    %v299 = vpack.c.b16 %v241, %v239
    %v300 = vpack.c.b16 %v242, %v240
    %v301 = vpack.c.b16 %v245, %v243
    %v302 = vpack.c.b16 %v246, %v244
    %v303 = vpack.c.b16 %v249, %v247
    %v304 = vpack.c.b16 %v250, %v248
    %v305 = vpack.c.b16 %v253, %v251
    %v306 = vpack.c.b16 %v254, %v252
    %v307 = vpack.c.b16 %v257, %v255
    %v308 = vpack.c.b16 %v258, %v256
    %v309 = vpack.c.b16 %v261, %v259
    %v310 = vpack.c.b16 %v262, %v260
    %v311 = vpack.c.b16 %v265, %v263
    %v312 = vpack.c.b16 %v266, %v264
    %v313 = vpack.c.b16 %v269, %v267
    %v314 = vpack.c.b16 %v270, %v268
    %v315 = vpack.c.b16 %v273, %v271
    %v316 = vpack.c.b16 %v274, %v272
    %v317 = vpack.c.b16 %v277, %v275
    %v318 = vpack.c.b16 %v278, %v276
    %v319 = vpack.c.b16 %v281, %v279
    %v320 = vpack.c.b16 %v282, %v280
    %vm357 = vcmask 359424
    %v359 = vsel %vm357, %v122, 0
    %vm361 = vcmask 1045504
    %v363 = vsel %vm361, %v319, 0
    %v366 = vsel %vm361, %v320, 0
    %368 = vmatprep.subr.bf16.mxu0 %v284
    %369 = vmatpush1.bf16.msra.mxu0 %v283
    %370 = vmatprep.subr.bf16.mxu0 %v286
    %371 = vmatpush1.bf16.msra.mxu0 %v285
    %372 = vmatprep.subr.bf16.mxu0 %v288
    %373 = vmatpush1.bf16.msra.mxu0 %v287
    %374 = vmatprep.subr.bf16.mxu0 %v290
    %375 = vmatpush1.bf16.msra.mxu0 %v289
    %376 = vmatprep.subr.bf16.mxu0 %v292
    %377 = vmatpush1.bf16.msra.mxu0 %v291
    %378 = vmatprep.subr.bf16.mxu0 %v294
    %379 = vmatpush1.bf16.msra.mxu0 %v293
    %380 = vmatprep.subr.bf16.mxu0 %v296
    %381 = vmatpush1.bf16.msra.mxu0 %v295
    %382 = vmatprep.subr.bf16.mxu0 %v298
    %383 = vmatpush1.bf16.msra.mxu0 %v297
    %384 = vmatprep.subr.bf16.mxu0 %v300
    %385 = vmatpush1.bf16.msra.mxu0 %v299
    %386 = vmatprep.subr.bf16.mxu0 %v302
    %387 = vmatpush1.bf16.msra.mxu0 %v301
    %388 = vmatprep.subr.bf16.mxu0 %v304
    %389 = vmatpush1.bf16.msra.mxu0 %v303
    %390 = vmatprep.subr.bf16.mxu0 %v306
    %391 = vmatpush1.bf16.msra.mxu0 %v305
    %392 = vmatprep.subr.bf16.mxu0 %v308
    %393 = vmatpush1.bf16.msra.mxu0 %v307
    %394 = vmatprep.subr.bf16.mxu0 %v310
    %395 = vmatpush1.bf16.msra.mxu0 %v309
    %396 = vmatprep.subr.bf16.mxu0 %v312
    %397 = vmatpush1.bf16.msra.mxu0 %v311
    %398 = vmatprep.subr.bf16.mxu0 %v314
    %399 = vmatpush1.bf16.msra.mxu0 %v313
    %400 = vmatprep.mubr.bf16.mxu0 %v121
    %401 = vmatmul.mubr.bf16.gmra.mrb[0].mxu0 %v120
    %v402 = vpop.f32.mrb[0].mxu0
    %v403 = vadd.f32 %v164, %v402
    %v404 = vpop.f32.mrb[0].mxu0
    %v405 = vadd.f32 %v168, %v404
    %v406 = vpop.f32.mrb[0].mxu0
    %v407 = vpop.f32.mrb[0].mxu0
    %408 = vdwg.mxu0
    %409 = vmatprep.subr.bf16.mxu0 %v316
    %410 = vmatpush1.bf16.msra.mxu0 %v315
    %411 = vmatprep.subr.bf16.mxu0 %v318
    %412 = vmatpush1.bf16.msra.mxu0 %v317
    %413 = vmatprep.subr.bf16.mxu0 %v366
    %414 = vmatpush1.bf16.msra.mxu0 %v363
    %415 = vmatprep.subr.bf16.mxu0 0
    %416 = vmatpush1.bf16.msra.mxu0 0
    %417 = vmatprep.subr.bf16.mxu0 0
    %418 = vmatpush1.bf16.msra.mxu0 0
    %419 = vmatprep.subr.bf16.mxu0 0
    %420 = vmatpush1.bf16.msra.mxu0 0
    %421 = vmatprep.subr.bf16.mxu0 0
    %422 = vmatpush1.bf16.msra.mxu0 0
    %423 = vmatprep.subr.bf16.mxu0 0
    %424 = vmatpush1.bf16.msra.mxu0 0
    %425 = vmatprep.subr.bf16.mxu0 0
    %426 = vmatpush1.bf16.msra.mxu0 0
    %427 = vmatprep.subr.bf16.mxu0 0
    %428 = vmatpush1.bf16.msra.mxu0 0
    %429 = vmatprep.subr.bf16.mxu0 0
    %430 = vmatpush1.bf16.msra.mxu0 0
    %431 = vmatprep.subr.bf16.mxu0 0
    %432 = vmatpush1.bf16.msra.mxu0 0
    %433 = vmatprep.subr.bf16.mxu0 0
    %434 = vmatpush1.bf16.msra.mxu0 0
    %435 = vmatprep.subr.bf16.mxu0 0
    %436 = vmatpush1.bf16.msra.mxu0 0
    %437 = vmatprep.subr.bf16.mxu0 0
    %438 = vmatpush1.bf16.msra.mxu0 0
    %439 = vmatprep.subr.bf16.mxu0 0
    %440 = vmatpush1.bf16.msra.mxu0 0
    %441 = vmatprep.mubr.bf16.mxu0 0
    %442 = vmatmul.mubr.bf16.gmra.mrb[0].mxu0 %v359
    %v443 = vpop.f32.mrb[0].mxu0
    %v444 = vadd.f32 %v403, %v443
    %v445 = vpop.f32.mrb[0].mxu0
    %v446 = vadd.f32 %v405, %v445
    %v447 = vpop.f32.mrb[0].mxu0
    %v448 = vpop.f32.mrb[0].mxu0
    %449 = vdwg.mxu0
    %v450 = vpack.c.bf16 %v444, %v444
    %v451 = vpack.c.bf16 %v446, %v446
    %v452 = vtanh.bf16.pop %v450
    %v453 = vtanh.bf16.pop %v451
    %v454 = vld [vmem:[#allocation7] sm:$0xf]
    %v455 = vld [vmem:[#allocation7 + $0x4] sm:$0xf]
    %v456 = vld [vmem:[#allocation7 + $0x8] sm:$0xf]
    %v457 = vld [vmem:[#allocation7 + $0xc] sm:$0xf]
    %v458 = vld [vmem:[#allocation7 + $0x10] sm:$0xf]
    %v459 = vld [vmem:[#allocation7 + $0x14] sm:$0xf]
    %v460 = vld [vmem:[#allocation7 + $0x18] sm:$0xf]
    %v461 = vld [vmem:[#allocation7 + $0x1c] sm:$0xf]
    %v462 = vld [vmem:[#allocation7 + $0x20] sm:$0xf]
    %v463 = vld [vmem:[#allocation7 + $0x24] sm:$0xf]
    %v464 = vld [vmem:[#allocation7 + $0x28] sm:$0xf]
    %v465 = vld [vmem:[#allocation7 + $0x2c] sm:$0xf]
    %v466 = vld [vmem:[#allocation7 + $0x30] sm:$0xf]
    %v467 = vld [vmem:[#allocation7 + $0x34] sm:$0xf]
    %v468 = vld [vmem:[#allocation7 + $0x38] sm:$0xf]
    %v469 = vld [vmem:[#allocation7 + $0x3c] sm:$0xf]
    %v470 = vld [vmem:[#allocation7 + $0x40] sm:$0xf]
    %v471 = vld [vmem:[#allocation7 + $0x44] sm:$0xf]
    %v472 = vld [vmem:[#allocation7 + $0x48] sm:$0xf]
    %v473 = vld [vmem:[#allocation7 + $0x4c] sm:$0xf]
    %v474 = vld [vmem:[#allocation7 + $0x50] sm:$0xf]
    %v475 = vld [vmem:[#allocation7 + $0x54] sm:$0xf]
    %v476 = vld [vmem:[#allocation7 + $0x58] sm:$0xf]
    %v477 = vld [vmem:[#allocation7 + $0x5c] sm:$0xf]
    %v478 = vld [vmem:[#allocation7 + $0x60] sm:$0xf]
    %v479 = vld [vmem:[#allocation7 + $0x64] sm:$0xf]
    %v480 = vld [vmem:[#allocation7 + $0x68] sm:$0xf]
    %v481 = vld [vmem:[#allocation7 + $0x6c] sm:$0xf]
    %v482 = vld [vmem:[#allocation7 + $0x70] sm:$0xf]
    %v483 = vld [vmem:[#allocation7 + $0x74] sm:$0xf]
    %v484 = vld [vmem:[#allocation7 + $0x78] sm:$0xf]
    %v485 = vld [vmem:[#allocation7 + $0x7c] sm:$0xf]
    %v486 = vlaneseq
    %v487 = vshrl.u32 %v486, 7
    %v488 = vsub.s32 1, %v487
    %v489 = vrot.slane %v114, %v488
    %v522 = vunpack.c.l.b16 %v454
    %v523 = vunpack.c.l.b16 %v455
    %v524 = vunpack.c.l.b16 %v456
    %v525 = vunpack.c.l.b16 %v457
    %v526 = vunpack.c.l.b16 %v458
    %v527 = vunpack.c.l.b16 %v459
    %v528 = vunpack.c.l.b16 %v460
    %v529 = vunpack.c.l.b16 %v461
    %v530 = vunpack.c.l.b16 %v462
    %v531 = vunpack.c.l.b16 %v463
    %v532 = vunpack.c.l.b16 %v464
    %v533 = vunpack.c.l.b16 %v465
    %v534 = vunpack.c.l.b16 %v466
    %v535 = vunpack.c.l.b16 %v467
    %v536 = vunpack.c.l.b16 %v468
    %v537 = vunpack.c.l.b16 %v469
    %v538 = vunpack.c.l.b16 %v470
    %v539 = vunpack.c.l.b16 %v471
    %v540 = vunpack.c.l.b16 %v472
    %v541 = vunpack.c.l.b16 %v473
    %v542 = vunpack.c.l.b16 %v474
    %v543 = vunpack.c.l.b16 %v475
    %v544 = vunpack.c.l.b16 %v476
    %v545 = vunpack.c.l.b16 %v477
    %v546 = vunpack.c.l.b16 %v478
    %v547 = vunpack.c.l.b16 %v479
    %v548 = vunpack.c.l.b16 %v480
    %v549 = vunpack.c.l.b16 %v481
    %v550 = vunpack.c.l.b16 %v482
    %v551 = vunpack.c.l.b16 %v483
    %v552 = vunpack.c.l.b16 %v484
    %v553 = vunpack.c.l.b16 %v485
    %v554 = vpack.c.b16 %v523, %v522
    %v555 = vpack.c.b16 %v525, %v524
    %v556 = vpack.c.b16 %v527, %v526
    %v557 = vpack.c.b16 %v529, %v528
    %v558 = vpack.c.b16 %v531, %v530
    %v559 = vpack.c.b16 %v533, %v532
    %v560 = vpack.c.b16 %v535, %v534
    %v561 = vpack.c.b16 %v537, %v536
    %v562 = vpack.c.b16 %v539, %v538
    %v563 = vpack.c.b16 %v541, %v540
    %v564 = vpack.c.b16 %v543, %v542
    %v565 = vpack.c.b16 %v545, %v544
    %v566 = vpack.c.b16 %v547, %v546
    %v567 = vpack.c.b16 %v549, %v548
    %v568 = vpack.c.b16 %v551, %v550
    %v569 = vpack.c.b16 %v553, %v552
    %586 = vmatprep.subr.bf16.mxu0 0
    %587 = vmatpush1.bf16.msra.mxu0 %v554
    %588 = vmatprep.subr.bf16.mxu0 0
    %589 = vmatpush1.bf16.msra.mxu0 %v555
    %590 = vmatprep.subr.bf16.mxu0 0
    %591 = vmatpush1.bf16.msra.mxu0 %v556
    %592 = vmatprep.subr.bf16.mxu0 0
    %593 = vmatpush1.bf16.msra.mxu0 %v557
    %594 = vmatprep.subr.bf16.mxu0 0
    %595 = vmatpush1.bf16.msra.mxu0 %v558
    %596 = vmatprep.subr.bf16.mxu0 0
    %597 = vmatpush1.bf16.msra.mxu0 %v559
    %598 = vmatprep.subr.bf16.mxu0 0
    %599 = vmatpush1.bf16.msra.mxu0 %v560
    %600 = vmatprep.subr.bf16.mxu0 0
    %601 = vmatpush1.bf16.msra.mxu0 %v561
    %602 = vmatprep.subr.bf16.mxu0 0
    %603 = vmatpush1.bf16.msra.mxu0 %v562
    %604 = vmatprep.subr.bf16.mxu0 0
    %605 = vmatpush1.bf16.msra.mxu0 %v563
    %606 = vmatprep.subr.bf16.mxu0 0
    %607 = vmatpush1.bf16.msra.mxu0 %v564
    %608 = vmatprep.subr.bf16.mxu0 0
    %609 = vmatpush1.bf16.msra.mxu0 %v565
    %610 = vmatprep.subr.bf16.mxu0 0
    %611 = vmatpush1.bf16.msra.mxu0 %v566
    %612 = vmatprep.subr.bf16.mxu0 0
    %613 = vmatpush1.bf16.msra.mxu0 %v567
    %614 = vmatprep.subr.bf16.mxu0 0
    %615 = vmatpush1.bf16.msra.mxu0 %v568
    %616 = vmatprep.subr.bf16.mxu0 0
    %617 = vmatpush1.bf16.msra.mxu0 %v569
    %618 = vmatprep.mubr.bf16.mxu0 %v453
    %619 = vmatmul.mubr.bf16.gmra.mrb[0].mxu0 %v452
    %v620 = vpop.f32.mrb[0].mxu0
    %v621 = vadd.f32 %v489, %v620
    %v622 = vpop.f32.mrb[0].mxu0
    %v623 = vpop.f32.mrb[0].mxu0
    %v624 = vpop.f32.mrb[0].mxu0
    %625 = vdwg.mxu0
    %v626 = vpack.c.bf16 %v621, %v621
    %v627 = vtanh.bf16.pop %v626
    %v628 = vld [vmem:[%s3] sm:$0xf]
    %v629 = vld [vmem:[%s3 + $0x4] sm:$0xf]
    %v630 = vld [vmem:[%s3 + $0x8] sm:$0xf]
    %v631 = vld [vmem:[%s3 + $0xc] sm:$0xf]
    %v632 = vld [vmem:[%s3 + $0x10] sm:$0xf]
    %v633 = vld [vmem:[%s3 + $0x14] sm:$0xf]
    %v634 = vld [vmem:[%s3 + $0x18] sm:$0xf]
    %v635 = vld [vmem:[%s3 + $0x1c] sm:$0xf]
    %v636 = vld [vmem:[%s3 + $0x20] sm:$0xf]
    %v637 = vld [vmem:[%s3 + $0x24] sm:$0xf]
    %v638 = vld [vmem:[%s3 + $0x28] sm:$0xf]
    %v639 = vld [vmem:[%s3 + $0x2c] sm:$0xf]
    %v640 = vld [vmem:[%s3 + $0x30] sm:$0xf]
    %v641 = vld [vmem:[%s3 + $0x34] sm:$0xf]
    %v642 = vld [vmem:[%s3 + $0x38] sm:$0xf]
    %v643 = vld [vmem:[%s3 + $0x3c] sm:$0xf]
    %v644 = vlaneseq
    %v645 = vshrl.u32 %v644, 7
    %v646 = vsub.s32 2, %v645
    %v647 = vrot.slane %v114, %v646
    %v664 = vunpack.c.l.b16 %v628
    %v665 = vunpack.c.l.b16 %v629
    %v666 = vunpack.c.l.b16 %v630
    %v667 = vunpack.c.l.b16 %v631
    %v668 = vunpack.c.l.b16 %v632
    %v669 = vunpack.c.l.b16 %v633
    %v670 = vunpack.c.l.b16 %v634
    %v671 = vunpack.c.l.b16 %v635
    %v672 = vunpack.c.l.b16 %v636
    %v673 = vunpack.c.l.b16 %v637
    %v674 = vunpack.c.l.b16 %v638
    %v675 = vunpack.c.l.b16 %v639
    %v676 = vunpack.c.l.b16 %v640
    %v677 = vunpack.c.l.b16 %v641
    %v678 = vunpack.c.l.b16 %v642
    %v679 = vunpack.c.l.b16 %v643
    %v680 = vpack.c.b16 %v665, %v664
    %v681 = vpack.c.b16 %v667, %v666
    %v682 = vpack.c.b16 %v669, %v668
    %v683 = vpack.c.b16 %v671, %v670
    %v684 = vpack.c.b16 %v673, %v672
    %v685 = vpack.c.b16 %v675, %v674
    %v686 = vpack.c.b16 %v677, %v676
    %v687 = vpack.c.b16 %v679, %v678
    %696 = vmatprep.subr.bf16.mxu0 0
    %697 = vmatpush1.bf16.msra.mxu0 %v680
    %698 = vmatprep.subr.bf16.mxu0 0
    %699 = vmatpush1.bf16.msra.mxu0 %v681
    %700 = vmatprep.subr.bf16.mxu0 0
    %701 = vmatpush1.bf16.msra.mxu0 %v682
    %702 = vmatprep.subr.bf16.mxu0 0
    %703 = vmatpush1.bf16.msra.mxu0 %v683
    %704 = vmatprep.subr.bf16.mxu0 0
    %705 = vmatpush1.bf16.msra.mxu0 %v684
    %706 = vmatprep.subr.bf16.mxu0 0
    %707 = vmatpush1.bf16.msra.mxu0 %v685
    %708 = vmatprep.subr.bf16.mxu0 0
    %709 = vmatpush1.bf16.msra.mxu0 %v686
    %710 = vmatprep.subr.bf16.mxu0 0
    %711 = vmatpush1.bf16.msra.mxu0 %v687
    %712 = vmatprep.subr.bf16.mxu0 0
    %713 = vmatpush1.bf16.msra.mxu0 0
    %714 = vmatprep.subr.bf16.mxu0 0
    %715 = vmatpush1.bf16.msra.mxu0 0
    %716 = vmatprep.subr.bf16.mxu0 0
    %717 = vmatpush1.bf16.msra.mxu0 0
    %718 = vmatprep.subr.bf16.mxu0 0
    %719 = vmatpush1.bf16.msra.mxu0 0
    %720 = vmatprep.subr.bf16.mxu0 0
    %721 = vmatpush1.bf16.msra.mxu0 0
    %722 = vmatprep.subr.bf16.mxu0 0
    %723 = vmatpush1.bf16.msra.mxu0 0
    %724 = vmatprep.subr.bf16.mxu0 0
    %725 = vmatpush1.bf16.msra.mxu0 0
    %726 = vmatprep.subr.bf16.mxu0 0
    %727 = vmatpush1.bf16.msra.mxu0 0
    %728 = vmatprep.mubr.bf16.mxu0 0
    %729 = vmatmul.mubr.bf16.gmra.mrb[0].mxu0 %v627
    %v730 = vpop.f32.mrb[0].mxu0
    %v731 = vadd.f32 %v647, %v730
    %v732 = vpop.f32.mrb[0].mxu0
    %v733 = vpop.f32.mrb[0].mxu0
    %v734 = vpop.f32.mrb[0].mxu0
    %735 = vdwg.mxu0
    %v736 = vpack.c.bf16 %v731, %v731
    %v737 = vtanh.bf16.pop %v736
    %v738 = vld [vmem:[%s4] sm:$0xff]
    %v739 = vld [vmem:[%s4 + $0x8] sm:$0xf]
    %v740 = vld [vmem:[%s4 + $0xc] sm:$0xff]
    %v741 = vld [vmem:[%s4 + $0x14] sm:$0xf]
    %v742 = vld [vmem:[%s4 + $0x18] sm:$0xff]
    %v743 = vld [vmem:[%s4 + $0x20] sm:$0xf]
    %v744 = vld [vmem:[%s4 + $0x24] sm:$0xff]
    %v745 = vld [vmem:[%s4 + $0x2c] sm:$0xf]
    %v746 = vld [vmem:[%s4 + $0x30] sm:$0xff]
    %v747 = vld [vmem:[%s4 + $0x38] sm:$0xf]
    %v748 = vld [vmem:[%s4 + $0x3c] sm:$0xff]
    %v749 = vld [vmem:[%s4 + $0x44] sm:$0xf]
    %v750 = vld [vmem:[%s4 + $0x48] sm:$0xff]
    %v751 = vld [vmem:[%s4 + $0x50] sm:$0xf]
    %v752 = vld [vmem:[%s4 + $0x54] sm:$0xff]
    %v753 = vld [vmem:[%s4 + $0x5c] sm:$0xf]
    %v754 = vlaneseq
    %v755 = vshrl.u32 %v754, 7
    %v756 = vsub.s32 3, %v755
    %v757 = vrot.slane %v114, %v756
    %v758 = vlaneseq
    %v759 = vshrl.u32 %v758, 7
    %v760 = vsub.s32 3, %v759
    %v761 = vrot.slane %v115, %v760
    %v762 = vlaneseq
    %v763 = vshrl.u32 %v762, 7
    %v764 = vsub.s32 3, %v763
    %v765 = vrot.slane %v116, %v764
    %v782 = vunpack.c.l.b16 %v738
    %v783 = vunpack.c.h.b16 %v738
    %v784 = vunpack.c.l.b16 %v739
    %v785 = vunpack.c.l.b16 %v740
    %v786 = vunpack.c.h.b16 %v740
    %v787 = vunpack.c.l.b16 %v741
    %v788 = vunpack.c.l.b16 %v742
    %v789 = vunpack.c.h.b16 %v742
    %v790 = vunpack.c.l.b16 %v743
    %v791 = vunpack.c.l.b16 %v744
    %v792 = vunpack.c.h.b16 %v744
    %v793 = vunpack.c.l.b16 %v745
    %v794 = vunpack.c.l.b16 %v746
    %v795 = vunpack.c.h.b16 %v746
    %v796 = vunpack.c.l.b16 %v747
    %v797 = vunpack.c.l.b16 %v748
    %v798 = vunpack.c.h.b16 %v748
    %v799 = vunpack.c.l.b16 %v749
    %v800 = vunpack.c.l.b16 %v750
    %v801 = vunpack.c.h.b16 %v750
    %v802 = vunpack.c.l.b16 %v751
    %v803 = vunpack.c.l.b16 %v752
    %v804 = vunpack.c.h.b16 %v752
    %v805 = vunpack.c.l.b16 %v753
    %v806 = vpack.c.b16 %v785, %v782
    %v807 = vpack.c.b16 %v786, %v783
    %v808 = vpack.c.b16 %v787, %v784
    %v809 = vpack.c.b16 %v791, %v788
    %v810 = vpack.c.b16 %v792, %v789
    %v811 = vpack.c.b16 %v793, %v790
    %v812 = vpack.c.b16 %v797, %v794
    %v813 = vpack.c.b16 %v798, %v795
    %v814 = vpack.c.b16 %v799, %v796
    %v815 = vpack.c.b16 %v803, %v800
    %v816 = vpack.c.b16 %v804, %v801
    %v817 = vpack.c.b16 %v805, %v802
    %vm830 = vcmask 523264
    %v832 = vsel %vm830, %v737, 0
    %834 = vmatprep.subr.bf16.mxu0 %v807
    %835 = vmatpush1.bf16.msra.mxu0 %v806
    %836 = vmatprep.subr.bf16.mxu0 %v810
    %837 = vmatpush1.bf16.msra.mxu0 %v809
    %838 = vmatprep.subr.bf16.mxu0 %v813
    %839 = vmatpush1.bf16.msra.mxu0 %v812
    %840 = vmatprep.subr.bf16.mxu0 %v816
    %841 = vmatpush1.bf16.msra.mxu0 %v815
    %842 = vmatprep.subr.bf16.mxu0 0
    %843 = vmatpush1.bf16.msra.mxu0 0
    %844 = vmatprep.subr.bf16.mxu0 0
    %845 = vmatpush1.bf16.msra.mxu0 0
    %846 = vmatprep.subr.bf16.mxu0 0
    %847 = vmatpush1.bf16.msra.mxu0 0
    %848 = vmatprep.subr.bf16.mxu0 0
    %849 = vmatpush1.bf16.msra.mxu0 0
    %850 = vmatprep.subr.bf16.mxu0 0
    %851 = vmatpush1.bf16.msra.mxu0 0
    %852 = vmatprep.subr.bf16.mxu0 0
    %853 = vmatpush1.bf16.msra.mxu0 0
    %854 = vmatprep.subr.bf16.mxu0 0
    %855 = vmatpush1.bf16.msra.mxu0 0
    %856 = vmatprep.subr.bf16.mxu0 0
    %857 = vmatpush1.bf16.msra.mxu0 0
    %858 = vmatprep.subr.bf16.mxu0 0
    %859 = vmatpush1.bf16.msra.mxu0 0
    %860 = vmatprep.subr.bf16.mxu0 0
    %861 = vmatpush1.bf16.msra.mxu0 0
    %862 = vmatprep.subr.bf16.mxu0 0
    %863 = vmatpush1.bf16.msra.mxu0 0
    %864 = vmatprep.subr.bf16.mxu0 0
    %865 = vmatpush1.bf16.msra.mxu0 0
    %866 = vmatprep.mubr.bf16.mxu0 0
    %867 = vmatmul.mubr.bf16.gmra.mrb[0].mxu0 %v832
    %v868 = vpop.f32.mrb[0].mxu0
    %v869 = vadd.f32 %v757, %v868
    %v870 = vpop.f32.mrb[0].mxu0
    %v871 = vadd.f32 %v761, %v870
    %v872 = vpop.f32.mrb[0].mxu0
    %v873 = vpop.f32.mrb[0].mxu0
    %874 = vdwg.mxu0
    %875 = vmatprep.subr.bf16.mxu0 0
    %876 = vmatpush1.bf16.msra.mxu0 %v808
    %877 = vmatprep.subr.bf16.mxu0 0
    %878 = vmatpush1.bf16.msra.mxu0 %v811
    %879 = vmatprep.subr.bf16.mxu0 0
    %880 = vmatpush1.bf16.msra.mxu0 %v814
    %881 = vmatprep.subr.bf16.mxu0 0
    %882 = vmatpush1.bf16.msra.mxu0 %v817
    %883 = vmatprep.subr.bf16.mxu0 0
    %884 = vmatpush1.bf16.msra.mxu0 0
    %885 = vmatprep.subr.bf16.mxu0 0
    %886 = vmatpush1.bf16.msra.mxu0 0
    %887 = vmatprep.subr.bf16.mxu0 0
    %888 = vmatpush1.bf16.msra.mxu0 0
    %889 = vmatprep.subr.bf16.mxu0 0
    %890 = vmatpush1.bf16.msra.mxu0 0
    %891 = vmatprep.subr.bf16.mxu0 0
    %892 = vmatpush1.bf16.msra.mxu0 0
    %893 = vmatprep.subr.bf16.mxu0 0
    %894 = vmatpush1.bf16.msra.mxu0 0
    %895 = vmatprep.subr.bf16.mxu0 0
    %896 = vmatpush1.bf16.msra.mxu0 0
    %897 = vmatprep.subr.bf16.mxu0 0
    %898 = vmatpush1.bf16.msra.mxu0 0
    %899 = vmatprep.subr.bf16.mxu0 0
    %900 = vmatpush1.bf16.msra.mxu0 0
    %901 = vmatprep.subr.bf16.mxu0 0
    %902 = vmatpush1.bf16.msra.mxu0 0
    %903 = vmatprep.subr.bf16.mxu0 0
    %904 = vmatpush1.bf16.msra.mxu0 0
    %905 = vmatprep.subr.bf16.mxu0 0
    %906 = vmatpush1.bf16.msra.mxu0 0
    %907 = vmatprep.mubr.bf16.mxu0 0
    %908 = vmatmul.mubr.bf16.gmra.mrb[0].mxu0 %v832
    %v909 = vpop.f32.mrb[0].mxu0
    %v910 = vadd.f32 %v765, %v909
    %v911 = vpop.f32.mrb[0].mxu0
    %v912 = vpop.f32.mrb[0].mxu0
    %v913 = vpop.f32.mrb[0].mxu0
    %914 = vdwg.mxu0
    %v915 = vpack.c.bf16 %v869, %v869
    %v916 = vtanh.bf16.pop %v915
    %v917 = vld [vmem:[#allocation8] sm:$0xf]
    %v918 = vld [vmem:[#allocation8 + $0x4] sm:$0xf]
    %v919 = vld [vmem:[#allocation8 + $0x8] sm:$0xf]
    %v920 = vld [vmem:[#allocation8 + $0xc] sm:$0xf]
    %v921 = vld [vmem:[#allocation8 + $0x10] sm:$0xf]
    %v922 = vld [vmem:[#allocation8 + $0x14] sm:$0xf]
    %v923 = vld [vmem:[#allocation8 + $0x18] sm:$0xf]
    %v924 = vld [vmem:[#allocation8 + $0x1c] sm:$0xf]
    %v925 = vlaneseq
    %v926 = vshrl.u32 %v925, 7
    %v927 = vsub.s32 4, %v926
    %v928 = vrot.slane %v114, %v927
    %v937 = vunpack.c.l.b16 %v917
    %v938 = vunpack.c.l.b16 %v918
    %v939 = vunpack.c.l.b16 %v919
    %v940 = vunpack.c.l.b16 %v920
    %v941 = vunpack.c.l.b16 %v921
    %v942 = vunpack.c.l.b16 %v922
    %v943 = vunpack.c.l.b16 %v923
    %v944 = vunpack.c.l.b16 %v924
    %v945 = vpack.c.b16 %v938, %v937
    %v946 = vpack.c.b16 %v940, %v939
    %v947 = vpack.c.b16 %v942, %v941
    %v948 = vpack.c.b16 %v944, %v943
    %v954 = vsel %vm830, %v916, 0
    %956 = vmatprep.subr.bf16.mxu0 0
    %957 = vmatpush1.bf16.msra.mxu0 %v945
    %958 = vmatprep.subr.bf16.mxu0 0
    %959 = vmatpush1.bf16.msra.mxu0 %v946
    %960 = vmatprep.subr.bf16.mxu0 0
    %961 = vmatpush1.bf16.msra.mxu0 %v947
    %962 = vmatprep.subr.bf16.mxu0 0
    %963 = vmatpush1.bf16.msra.mxu0 %v948
    %964 = vmatprep.subr.bf16.mxu0 0
    %965 = vmatpush1.bf16.msra.mxu0 0
    %966 = vmatprep.subr.bf16.mxu0 0
    %967 = vmatpush1.bf16.msra.mxu0 0
    %968 = vmatprep.subr.bf16.mxu0 0
    %969 = vmatpush1.bf16.msra.mxu0 0
    %970 = vmatprep.subr.bf16.mxu0 0
    %971 = vmatpush1.bf16.msra.mxu0 0
    %972 = vmatprep.subr.bf16.mxu0 0
    %973 = vmatpush1.bf16.msra.mxu0 0
    %974 = vmatprep.subr.bf16.mxu0 0
    %975 = vmatpush1.bf16.msra.mxu0 0
    %976 = vmatprep.subr.bf16.mxu0 0
    %977 = vmatpush1.bf16.msra.mxu0 0
    %978 = vmatprep.subr.bf16.mxu0 0
    %979 = vmatpush1.bf16.msra.mxu0 0
    %980 = vmatprep.subr.bf16.mxu0 0
    %981 = vmatpush1.bf16.msra.mxu0 0
    %982 = vmatprep.subr.bf16.mxu0 0
    %983 = vmatpush1.bf16.msra.mxu0 0
    %984 = vmatprep.subr.bf16.mxu0 0
    %985 = vmatpush1.bf16.msra.mxu0 0
    %986 = vmatprep.subr.bf16.mxu0 0
    %987 = vmatpush1.bf16.msra.mxu0 0
    %988 = vmatprep.mubr.bf16.mxu0 0
    %989 = vmatmul.mubr.bf16.gmra.mrb[0].mxu0 %v954
    %v990 = vpop.f32.mrb[0].mxu0
    %v991 = vadd.f32 %v928, %v990
    %v992 = vpop.f32.mrb[0].mxu0
    %v993 = vpop.f32.mrb[0].mxu0
    %v994 = vpop.f32.mrb[0].mxu0
    %995 = vdwg.mxu0
    %v996 = vpack.c.bf16 %v991, %v991
    %v997 = vtanh.bf16.pop %v996
    %v998 = vld [vmem:[#allocation10] sm:$0xff]
    %v999 = vld [vmem:[#allocation10 + $0x8] sm:$0xff]
    %v1000 = vld [vmem:[#allocation10 + $0x10] sm:$0xff]
    %v1001 = vld [vmem:[#allocation10 + $0x18] sm:$0xff]
    %v1002 = vld [vmem:[#allocation10 + $0x20] sm:$0xff]
    %v1003 = vld [vmem:[#allocation10 + $0x28] sm:$0xff]
    %v1004 = vld [vmem:[#allocation10 + $0x30] sm:$0xff]
    %v1005 = vld [vmem:[#allocation10 + $0x38] sm:$0xff]
    %v1006 = vld [vmem:[#allocation10 + $0x40] sm:$0xff]
    %v1007 = vld [vmem:[#allocation10 + $0x48] sm:$0xff]
    %v1008 = vld [vmem:[#allocation10 + $0x50] sm:$0xff]
    %v1009 = vld [vmem:[#allocation10 + $0x58] sm:$0xff]
    %v1010 = vld [vmem:[#allocation10 + $0x60] sm:$0xff]
    %v1011 = vld [vmem:[#allocation10 + $0x68] sm:$0xff]
    %v1012 = vld [vmem:[#allocation10 + $0x70] sm:$0xff]
    %v1013 = vld [vmem:[#allocation10 + $0x78] sm:$0xff]
    %v1014 = vlaneseq
    %v1015 = vshrl.u32 %v1014, 7
    %v1016 = vsub.s32 5, %v1015
    %v1017 = vrot.slane %v114, %v1016
    %v1018 = vlaneseq
    %v1019 = vshrl.u32 %v1018, 7
    %v1020 = vsub.s32 5, %v1019
    %v1021 = vrot.slane %v115, %v1020
    %v1038 = vunpack.c.l.b16 %v998
    %v1039 = vunpack.c.h.b16 %v998
    %v1040 = vunpack.c.l.b16 %v999
    %v1041 = vunpack.c.h.b16 %v999
    %v1042 = vunpack.c.l.b16 %v1000
    %v1043 = vunpack.c.h.b16 %v1000
    %v1044 = vunpack.c.l.b16 %v1001
    %v1045 = vunpack.c.h.b16 %v1001
    %v1046 = vunpack.c.l.b16 %v1002
    %v1047 = vunpack.c.h.b16 %v1002
    %v1048 = vunpack.c.l.b16 %v1003
    %v1049 = vunpack.c.h.b16 %v1003
    %v1050 = vunpack.c.l.b16 %v1004
    %v1051 = vunpack.c.h.b16 %v1004
    %v1052 = vunpack.c.l.b16 %v1005
    %v1053 = vunpack.c.h.b16 %v1005
    %v1054 = vunpack.c.l.b16 %v1006
    %v1055 = vunpack.c.h.b16 %v1006
    %v1056 = vunpack.c.l.b16 %v1007
    %v1057 = vunpack.c.h.b16 %v1007
    %v1058 = vunpack.c.l.b16 %v1008
    %v1059 = vunpack.c.h.b16 %v1008
    %v1060 = vunpack.c.l.b16 %v1009
    %v1061 = vunpack.c.h.b16 %v1009
    %v1062 = vunpack.c.l.b16 %v1010
    %v1063 = vunpack.c.h.b16 %v1010
    %v1064 = vunpack.c.l.b16 %v1011
    %v1065 = vunpack.c.h.b16 %v1011
    %v1066 = vunpack.c.l.b16 %v1012
    %v1067 = vunpack.c.h.b16 %v1012
    %v1068 = vunpack.c.l.b16 %v1013
    %v1069 = vunpack.c.h.b16 %v1013
    %v1070 = vpack.c.b16 %v1040, %v1038
    %v1071 = vpack.c.b16 %v1041, %v1039
    %v1072 = vpack.c.b16 %v1044, %v1042
    %v1073 = vpack.c.b16 %v1045, %v1043
    %v1074 = vpack.c.b16 %v1048, %v1046
    %v1075 = vpack.c.b16 %v1049, %v1047
    %v1076 = vpack.c.b16 %v1052, %v1050
    %v1077 = vpack.c.b16 %v1053, %v1051
    %v1078 = vpack.c.b16 %v1056, %v1054
    %v1079 = vpack.c.b16 %v1057, %v1055
    %v1080 = vpack.c.b16 %v1060, %v1058
    %v1081 = vpack.c.b16 %v1061, %v1059
    %v1082 = vpack.c.b16 %v1064, %v1062
    %v1083 = vpack.c.b16 %v1065, %v1063
    %v1084 = vpack.c.b16 %v1068, %v1066
    %v1085 = vpack.c.b16 %v1069, %v1067
    %1102 = vmatprep.subr.bf16.mxu0 %v1071
    %1103 = vmatpush1.bf16.msra.mxu0 %v1070
    %1104 = vmatprep.subr.bf16.mxu0 %v1073
    %1105 = vmatpush1.bf16.msra.mxu0 %v1072
    %1106 = vmatprep.subr.bf16.mxu0 %v1075
    %1107 = vmatpush1.bf16.msra.mxu0 %v1074
    %1108 = vmatprep.subr.bf16.mxu0 %v1077
    %1109 = vmatpush1.bf16.msra.mxu0 %v1076
    %1110 = vmatprep.subr.bf16.mxu0 %v1079
    %1111 = vmatpush1.bf16.msra.mxu0 %v1078
    %1112 = vmatprep.subr.bf16.mxu0 %v1081
    %1113 = vmatpush1.bf16.msra.mxu0 %v1080
    %1114 = vmatprep.subr.bf16.mxu0 %v1083
    %1115 = vmatpush1.bf16.msra.mxu0 %v1082
    %1116 = vmatprep.subr.bf16.mxu0 %v1085
    %1117 = vmatpush1.bf16.msra.mxu0 %v1084
    %1118 = vmatprep.subr.bf16.mxu0 0
    %1119 = vmatpush1.bf16.msra.mxu0 0
    %1120 = vmatprep.subr.bf16.mxu0 0
    %1121 = vmatpush1.bf16.msra.mxu0 0
    %1122 = vmatprep.subr.bf16.mxu0 0
    %1123 = vmatpush1.bf16.msra.mxu0 0
    %1124 = vmatprep.subr.bf16.mxu0 0
    %1125 = vmatpush1.bf16.msra.mxu0 0
    %1126 = vmatprep.subr.bf16.mxu0 0
    %1127 = vmatpush1.bf16.msra.mxu0 0
    %1128 = vmatprep.subr.bf16.mxu0 0
    %1129 = vmatpush1.bf16.msra.mxu0 0
    %1130 = vmatprep.subr.bf16.mxu0 0
    %1131 = vmatpush1.bf16.msra.mxu0 0
    %1132 = vmatprep.subr.bf16.mxu0 0
    %1133 = vmatpush1.bf16.msra.mxu0 0
    %1134 = vmatprep.mubr.bf16.mxu0 0
    %1135 = vmatmul.mubr.bf16.gmra.mrb[0].mxu0 %v997
    %v1136 = vpop.f32.mrb[0].mxu0
    %v1137 = vadd.f32 %v1017, %v1136
    %v1138 = vpop.f32.mrb[0].mxu0
    %v1139 = vadd.f32 %v1021, %v1138
    %v1140 = vpop.f32.mrb[0].mxu0
    %v1141 = vpop.f32.mrb[0].mxu0
    %1142 = vdwg.mxu0
    %v1143 = vpack.c.bf16 %v1137, %v1137
    %v1144 = vpack.c.bf16 %v1139, %v1139
    %v1145 = vtanh.bf16.pop %v1143
    %v1146 = vtanh.bf16.pop %v1144
    %v1147 = vld [vmem:[#allocation11] sm:$0xff]
    %v1148 = vld [vmem:[#allocation11 + $0x8] sm:$0xf]
    %v1149 = vld [vmem:[#allocation11 + $0xc] sm:$0xff]
    %v1150 = vld [vmem:[#allocation11 + $0x14] sm:$0xf]
    %v1151 = vld [vmem:[#allocation11 + $0x18] sm:$0xff]
    %v1152 = vld [vmem:[#allocation11 + $0x20] sm:$0xf]
    %v1153 = vld [vmem:[#allocation11 + $0x24] sm:$0xff]
    %v1154 = vld [vmem:[#allocation11 + $0x2c] sm:$0xf]
    %v1155 = vld [vmem:[#allocation11 + $0x30] sm:$0xff]
    %v1156 = vld [vmem:[#allocation11 + $0x38] sm:$0xf]
    %v1157 = vld [vmem:[#allocation11 + $0x3c] sm:$0xff]
    %v1158 = vld [vmem:[#allocation11 + $0x44] sm:$0xf]
    %v1159 = vld [vmem:[#allocation11 + $0x48] sm:$0xff]
    %v1160 = vld [vmem:[#allocation11 + $0x50] sm:$0xf]
    %v1161 = vld [vmem:[#allocation11 + $0x54] sm:$0xff]
    %v1162 = vld [vmem:[#allocation11 + $0x5c] sm:$0xf]
    %v1163 = vld [vmem:[#allocation11 + $0x60] sm:$0xff]
    %v1164 = vld [vmem:[#allocation11 + $0x68] sm:$0xf]
    %v1165 = vld [vmem:[#allocation11 + $0x6c] sm:$0xff]
    %v1166 = vld [vmem:[#allocation11 + $0x74] sm:$0xf]
    %v1167 = vld [vmem:[#allocation11 + $0x78] sm:$0xff]
    %v1168 = vld [vmem:[#allocation11 + $0x80] sm:$0xf]
    %v1169 = vld [vmem:[#allocation11 + $0x84] sm:$0xff]
    %v1170 = vld [vmem:[#allocation11 + $0x8c] sm:$0xf]
    %v1171 = vld [vmem:[#allocation11 + $0x90] sm:$0xff]
    %v1172 = vld [vmem:[#allocation11 + $0x98] sm:$0xf]
    %v1173 = vld [vmem:[#allocation11 + $0x9c] sm:$0xff]
    %v1174 = vld [vmem:[#allocation11 + $0xa4] sm:$0xf]
    %v1175 = vld [vmem:[#allocation11 + $0xa8] sm:$0xff]
    %v1176 = vld [vmem:[#allocation11 + $0xb0] sm:$0xf]
    %v1177 = vld [vmem:[#allocation11 + $0xb4] sm:$0xff]
    %v1178 = vld [vmem:[#allocation11 + $0xbc] sm:$0xf]
    %v1179 = vld [vmem:[#allocation11 + $0xc0] sm:$0xff]
    %v1180 = vld [vmem:[#allocation11 + $0xc8] sm:$0xf]
    %v1181 = vld [vmem:[#allocation11 + $0xcc] sm:$0xff]
    %v1182 = vld [vmem:[#allocation11 + $0xd4] sm:$0xf]
    %v1183 = vld [vmem:[#allocation11 + $0xd8] sm:$0xff]
    %v1184 = vld [vmem:[#allocation11 + $0xe0] sm:$0xf]
    %v1185 = vld [vmem:[#allocation11 + $0xe4] sm:$0xff]
    %v1186 = vld [vmem:[#allocation11 + $0xec] sm:$0xf]
    %v1187 = vld [vmem:[#allocation11 + $0xf0] sm:$0xff]
    %v1188 = vld [vmem:[#allocation11 + $0xf8] sm:$0xf]
    %v1189 = vld [vmem:[#allocation11 + $0xfc] sm:$0xff]
    %v1190 = vld [vmem:[#allocation11 + $0x104] sm:$0xf]
    %v1191 = vld [vmem:[#allocation11 + $0x108] sm:$0xff]
    %v1192 = vld [vmem:[#allocation11 + $0x110] sm:$0xf]
    %v1193 = vld [vmem:[#allocation11 + $0x114] sm:$0xff]
    %v1194 = vld [vmem:[#allocation11 + $0x11c] sm:$0xf]
    %v1195 = vld [vmem:[#allocation11 + $0x120] sm:$0xff]
    %v1196 = vld [vmem:[#allocation11 + $0x128] sm:$0xf]
    %v1197 = vld [vmem:[#allocation11 + $0x12c] sm:$0xff]
    %v1198 = vld [vmem:[#allocation11 + $0x134] sm:$0xf]
    %v1199 = vld [vmem:[#allocation11 + $0x138] sm:$0xff]
    %v1200 = vld [vmem:[#allocation11 + $0x140] sm:$0xf]
    %v1201 = vld [vmem:[#allocation11 + $0x144] sm:$0xff]
    %v1202 = vld [vmem:[#allocation11 + $0x14c] sm:$0xf]
    %v1203 = vld [vmem:[#allocation11 + $0x150] sm:$0xff]
    %v1204 = vld [vmem:[#allocation11 + $0x158] sm:$0xf]
    %v1205 = vld [vmem:[#allocation11 + $0x15c] sm:$0xff]
    %v1206 = vld [vmem:[#allocation11 + $0x164] sm:$0xf]
    %v1207 = vld [vmem:[#allocation11 + $0x168] sm:$0xff]
    %v1208 = vld [vmem:[#allocation11 + $0x170] sm:$0xf]
    %v1209 = vld [vmem:[#allocation11 + $0x174] sm:$0xff]
    %v1210 = vld [vmem:[#allocation11 + $0x17c] sm:$0xf]
    %v1211 = vlaneseq
    %v1212 = vshrl.u32 %v1211, 7
    %v1213 = vsub.s32 6, %v1212
    %v1214 = vrot.slane %v114, %v1213
    %v1215 = vlaneseq
    %v1216 = vshrl.u32 %v1215, 7
    %v1217 = vsub.s32 6, %v1216
    %v1218 = vrot.slane %v115, %v1217
    %v1219 = vlaneseq
    %v1220 = vshrl.u32 %v1219, 7
    %v1221 = vsub.s32 6, %v1220
    %v1222 = vrot.slane %v116, %v1221
    %v1287 = vunpack.c.l.b16 %v1147
    %v1288 = vunpack.c.h.b16 %v1147
    %v1289 = vunpack.c.l.b16 %v1148
    %v1290 = vunpack.c.l.b16 %v1149
    %v1291 = vunpack.c.h.b16 %v1149
    %v1292 = vunpack.c.l.b16 %v1150
    %v1293 = vunpack.c.l.b16 %v1151
    %v1294 = vunpack.c.h.b16 %v1151
    %v1295 = vunpack.c.l.b16 %v1152
    %v1296 = vunpack.c.l.b16 %v1153
    %v1297 = vunpack.c.h.b16 %v1153
    %v1298 = vunpack.c.l.b16 %v1154
    %v1299 = vunpack.c.l.b16 %v1155
    %v1300 = vunpack.c.h.b16 %v1155
    %v1301 = vunpack.c.l.b16 %v1156
    %v1302 = vunpack.c.l.b16 %v1157
    %v1303 = vunpack.c.h.b16 %v1157
    %v1304 = vunpack.c.l.b16 %v1158
    %v1305 = vunpack.c.l.b16 %v1159
    %v1306 = vunpack.c.h.b16 %v1159
    %v1307 = vunpack.c.l.b16 %v1160
    %v1308 = vunpack.c.l.b16 %v1161
    %v1309 = vunpack.c.h.b16 %v1161
    %v1310 = vunpack.c.l.b16 %v1162
    %v1311 = vunpack.c.l.b16 %v1163
    %v1312 = vunpack.c.h.b16 %v1163
    %v1313 = vunpack.c.l.b16 %v1164
    %v1314 = vunpack.c.l.b16 %v1165
    %v1315 = vunpack.c.h.b16 %v1165
    %v1316 = vunpack.c.l.b16 %v1166
    %v1317 = vunpack.c.l.b16 %v1167
    %v1318 = vunpack.c.h.b16 %v1167
    %v1319 = vunpack.c.l.b16 %v1168
    %v1320 = vunpack.c.l.b16 %v1169
    %v1321 = vunpack.c.h.b16 %v1169
    %v1322 = vunpack.c.l.b16 %v1170
    %v1323 = vunpack.c.l.b16 %v1171
    %v1324 = vunpack.c.h.b16 %v1171
    %v1325 = vunpack.c.l.b16 %v1172
    %v1326 = vunpack.c.l.b16 %v1173
    %v1327 = vunpack.c.h.b16 %v1173
    %v1328 = vunpack.c.l.b16 %v1174
    %v1329 = vunpack.c.l.b16 %v1175
    %v1330 = vunpack.c.h.b16 %v1175
    %v1331 = vunpack.c.l.b16 %v1176
    %v1332 = vunpack.c.l.b16 %v1177
    %v1333 = vunpack.c.h.b16 %v1177
    %v1334 = vunpack.c.l.b16 %v1178
    %v1335 = vunpack.c.l.b16 %v1179
    %v1336 = vunpack.c.h.b16 %v1179
    %v1337 = vunpack.c.l.b16 %v1180
    %v1338 = vunpack.c.l.b16 %v1181
    %v1339 = vunpack.c.h.b16 %v1181
    %v1340 = vunpack.c.l.b16 %v1182
    %v1341 = vunpack.c.l.b16 %v1183
    %v1342 = vunpack.c.h.b16 %v1183
    %v1343 = vunpack.c.l.b16 %v1184
    %v1344 = vunpack.c.l.b16 %v1185
    %v1345 = vunpack.c.h.b16 %v1185
    %v1346 = vunpack.c.l.b16 %v1186
    %v1347 = vunpack.c.l.b16 %v1187
    %v1348 = vunpack.c.h.b16 %v1187
    %v1349 = vunpack.c.l.b16 %v1188
    %v1350 = vunpack.c.l.b16 %v1189
    %v1351 = vunpack.c.h.b16 %v1189
    %v1352 = vunpack.c.l.b16 %v1190
    %v1353 = vunpack.c.l.b16 %v1191
    %v1354 = vunpack.c.h.b16 %v1191
    %v1355 = vunpack.c.l.b16 %v1192
    %v1356 = vunpack.c.l.b16 %v1193
    %v1357 = vunpack.c.h.b16 %v1193
    %v1358 = vunpack.c.l.b16 %v1194
    %v1359 = vunpack.c.l.b16 %v1195
    %v1360 = vunpack.c.h.b16 %v1195
    %v1361 = vunpack.c.l.b16 %v1196
    %v1362 = vunpack.c.l.b16 %v1197
    %v1363 = vunpack.c.h.b16 %v1197
    %v1364 = vunpack.c.l.b16 %v1198
    %v1365 = vunpack.c.l.b16 %v1199
    %v1366 = vunpack.c.h.b16 %v1199
    %v1367 = vunpack.c.l.b16 %v1200
    %v1368 = vunpack.c.l.b16 %v1201
    %v1369 = vunpack.c.h.b16 %v1201
    %v1370 = vunpack.c.l.b16 %v1202
    %v1371 = vunpack.c.l.b16 %v1203
    %v1372 = vunpack.c.h.b16 %v1203
    %v1373 = vunpack.c.l.b16 %v1204
    %v1374 = vunpack.c.l.b16 %v1205
    %v1375 = vunpack.c.h.b16 %v1205
    %v1376 = vunpack.c.l.b16 %v1206
    %v1377 = vunpack.c.l.b16 %v1207
    %v1378 = vunpack.c.h.b16 %v1207
    %v1379 = vunpack.c.l.b16 %v1208
    %v1380 = vunpack.c.l.b16 %v1209
    %v1381 = vunpack.c.h.b16 %v1209
    %v1382 = vunpack.c.l.b16 %v1210
    %v1383 = vpack.c.b16 %v1290, %v1287
    %v1384 = vpack.c.b16 %v1291, %v1288
    %v1385 = vpack.c.b16 %v1292, %v1289
    %v1386 = vpack.c.b16 %v1296, %v1293
    %v1387 = vpack.c.b16 %v1297, %v1294
    %v1388 = vpack.c.b16 %v1298, %v1295
    %v1389 = vpack.c.b16 %v1302, %v1299
    %v1390 = vpack.c.b16 %v1303, %v1300
    %v1391 = vpack.c.b16 %v1304, %v1301
    %v1392 = vpack.c.b16 %v1308, %v1305
    %v1393 = vpack.c.b16 %v1309, %v1306
    %v1394 = vpack.c.b16 %v1310, %v1307
    %v1395 = vpack.c.b16 %v1314, %v1311
    %v1396 = vpack.c.b16 %v1315, %v1312
    %v1397 = vpack.c.b16 %v1316, %v1313
    %v1398 = vpack.c.b16 %v1320, %v1317
    %v1399 = vpack.c.b16 %v1321, %v1318
    %v1400 = vpack.c.b16 %v1322, %v1319
    %v1401 = vpack.c.b16 %v1326, %v1323
    %v1402 = vpack.c.b16 %v1327, %v1324
    %v1403 = vpack.c.b16 %v1328, %v1325
    %v1404 = vpack.c.b16 %v1332, %v1329
    %v1405 = vpack.c.b16 %v1333, %v1330
    %v1406 = vpack.c.b16 %v1334, %v1331
    %v1407 = vpack.c.b16 %v1338, %v1335
    %v1408 = vpack.c.b16 %v1339, %v1336
    %v1409 = vpack.c.b16 %v1340, %v1337
    %v1410 = vpack.c.b16 %v1344, %v1341
    %v1411 = vpack.c.b16 %v1345, %v1342
    %v1412 = vpack.c.b16 %v1346, %v1343
    %v1413 = vpack.c.b16 %v1350, %v1347
    %v1414 = vpack.c.b16 %v1351, %v1348
    %v1415 = vpack.c.b16 %v1352, %v1349
    %v1416 = vpack.c.b16 %v1356, %v1353
    %v1417 = vpack.c.b16 %v1357, %v1354
    %v1418 = vpack.c.b16 %v1358, %v1355
    %v1419 = vpack.c.b16 %v1362, %v1359
    %v1420 = vpack.c.b16 %v1363, %v1360
    %v1421 = vpack.c.b16 %v1364, %v1361
    %v1422 = vpack.c.b16 %v1368, %v1365
    %v1423 = vpack.c.b16 %v1369, %v1366
    %v1424 = vpack.c.b16 %v1370, %v1367
    %v1425 = vpack.c.b16 %v1374, %v1371
    %v1426 = vpack.c.b16 %v1375, %v1372
    %v1427 = vpack.c.b16 %v1376, %v1373
    %v1428 = vpack.c.b16 %v1380, %v1377
    %v1429 = vpack.c.b16 %v1381, %v1378
    %v1430 = vpack.c.b16 %v1382, %v1379
    %1479 = vmatprep.subr.bf16.mxu0 %v1384
    %1480 = vmatpush1.bf16.msra.mxu0 %v1383
    %1481 = vmatprep.subr.bf16.mxu0 %v1387
    %1482 = vmatpush1.bf16.msra.mxu0 %v1386
    %1483 = vmatprep.subr.bf16.mxu0 %v1390
    %1484 = vmatpush1.bf16.msra.mxu0 %v1389
    %1485 = vmatprep.subr.bf16.mxu0 %v1393
    %1486 = vmatpush1.bf16.msra.mxu0 %v1392
    %1487 = vmatprep.subr.bf16.mxu0 %v1396
    %1488 = vmatpush1.bf16.msra.mxu0 %v1395
    %1489 = vmatprep.subr.bf16.mxu0 %v1399
    %1490 = vmatpush1.bf16.msra.mxu0 %v1398
    %1491 = vmatprep.subr.bf16.mxu0 %v1402
    %1492 = vmatpush1.bf16.msra.mxu0 %v1401
    %1493 = vmatprep.subr.bf16.mxu0 %v1405
    %1494 = vmatpush1.bf16.msra.mxu0 %v1404
    %1495 = vmatprep.subr.bf16.mxu0 %v1408
    %1496 = vmatpush1.bf16.msra.mxu0 %v1407
    %1497 = vmatprep.subr.bf16.mxu0 %v1411
    %1498 = vmatpush1.bf16.msra.mxu0 %v1410
    %1499 = vmatprep.subr.bf16.mxu0 %v1414
    %1500 = vmatpush1.bf16.msra.mxu0 %v1413
    %1501 = vmatprep.subr.bf16.mxu0 %v1417
    %1502 = vmatpush1.bf16.msra.mxu0 %v1416
    %1503 = vmatprep.subr.bf16.mxu0 %v1420
    %1504 = vmatpush1.bf16.msra.mxu0 %v1419
    %1505 = vmatprep.subr.bf16.mxu0 %v1423
    %1506 = vmatpush1.bf16.msra.mxu0 %v1422
    %1507 = vmatprep.subr.bf16.mxu0 %v1426
    %1508 = vmatpush1.bf16.msra.mxu0 %v1425
    %1509 = vmatprep.subr.bf16.mxu0 %v1429
    %1510 = vmatpush1.bf16.msra.mxu0 %v1428
    %1511 = vmatprep.mubr.bf16.mxu0 %v1146
    %1512 = vmatmul.mubr.bf16.gmra.mrb[0].mxu0 %v1145
    %v1513 = vpop.f32.mrb[0].mxu0
    %v1514 = vadd.f32 %v1214, %v1513
    %v1515 = vpop.f32.mrb[0].mxu0
    %v1516 = vadd.f32 %v1218, %v1515
    %v1517 = vpop.f32.mrb[0].mxu0
    %v1518 = vpop.f32.mrb[0].mxu0
    %1519 = vdwg.mxu0
    %1520 = vmatprep.subr.bf16.mxu0 0
    %1521 = vmatpush1.bf16.msra.mxu0 %v1385
    %1522 = vmatprep.subr.bf16.mxu0 0
    %1523 = vmatpush1.bf16.msra.mxu0 %v1388
    %1524 = vmatprep.subr.bf16.mxu0 0
    %1525 = vmatpush1.bf16.msra.mxu0 %v1391
    %1526 = vmatprep.subr.bf16.mxu0 0
    %1527 = vmatpush1.bf16.msra.mxu0 %v1394
    %1528 = vmatprep.subr.bf16.mxu0 0
    %1529 = vmatpush1.bf16.msra.mxu0 %v1397
    %1530 = vmatprep.subr.bf16.mxu0 0
    %1531 = vmatpush1.bf16.msra.mxu0 %v1400
    %1532 = vmatprep.subr.bf16.mxu0 0
    %1533 = vmatpush1.bf16.msra.mxu0 %v1403
    %1534 = vmatprep.subr.bf16.mxu0 0
    %1535 = vmatpush1.bf16.msra.mxu0 %v1406
    %1536 = vmatprep.subr.bf16.mxu0 0
    %1537 = vmatpush1.bf16.msra.mxu0 %v1409
    %1538 = vmatprep.subr.bf16.mxu0 0
    %1539 = vmatpush1.bf16.msra.mxu0 %v1412
    %1540 = vmatprep.subr.bf16.mxu0 0
    %1541 = vmatpush1.bf16.msra.mxu0 %v1415
    %1542 = vmatprep.subr.bf16.mxu0 0
    %1543 = vmatpush1.bf16.msra.mxu0 %v1418
    %1544 = vmatprep.subr.bf16.mxu0 0
    %1545 = vmatpush1.bf16.msra.mxu0 %v1421
    %1546 = vmatprep.subr.bf16.mxu0 0
    %1547 = vmatpush1.bf16.msra.mxu0 %v1424
    %1548 = vmatprep.subr.bf16.mxu0 0
    %1549 = vmatpush1.bf16.msra.mxu0 %v1427
    %1550 = vmatprep.subr.bf16.mxu0 0
    %1551 = vmatpush1.bf16.msra.mxu0 %v1430
    %1552 = vmatprep.mubr.bf16.mxu0 %v1146
    %1553 = vmatmul.mubr.bf16.gmra.mrb[0].mxu0 %v1145
    %v1554 = vpop.f32.mrb[0].mxu0
    %v1555 = vadd.f32 %v1222, %v1554
    %v1556 = vpop.f32.mrb[0].mxu0
    %v1557 = vpop.f32.mrb[0].mxu0
    %v1558 = vpop.f32.mrb[0].mxu0
    %1559 = vdwg.mxu0
    %v1560 = vmul.f32 %v1514, 0.5
    %v1561 = vmul.f32 %v1516, 0.5
    %v1562 = vmul.f32 %v1555, 0.5
    %v1563 = vpack.c.bf16 %v1560, %v1560
    %v1564 = vpack.c.bf16 %v1561, %v1561
    %v1565 = vpack.c.bf16 %v1562, %v1562
    %v1566 = vtanh.bf16.pop %v1563
    %v1567 = vtanh.bf16.pop %v1564
    %v1568 = vtanh.bf16.pop %v1565
    %v1569 = vunpack.c.l.bf16 %v1566
    %v1570 = vunpack.c.l.bf16 %v1567
    %v1571 = vunpack.c.l.bf16 %v1568
    %v1572 = vadd.f32 %v1569, 1.0
    %v1573 = vadd.f32 %v1570, 1.0
    %v1574 = vadd.f32 %v1571, 1.0
    %v1575 = vmul.f32 %v1572, 0.5
    %v1576 = vmul.f32 %v1573, 0.5
    %v1577 = vmul.f32 %v1574, 0.5
    %v1578 = vlaneseq
    %v1579 = vand.u32 %v1578, 127
    %v1580 = vadd.s32 %v1579, 128
    %v1581 = vadd.s32 %v1579, 256
    %vm1582 = vcmp.lt.s32.totalorder %v1579, 300
    %vm1583 = vcmp.lt.s32.totalorder %v1580, 300
    %vm1584 = vcmp.lt.s32.totalorder %v1581, 300
    %v1585 = vsel %vm1582, 1, 0
    %v1586 = vsel %vm1583, 1, 0
    %v1587 = vsel %vm1584, 1, 0
    %vm1588 = vcmp.eq.s32.totalorder %v1585, 1
    %vm1589 = vcmp.eq.s32.totalorder %v1586, 1
    %vm1590 = vcmp.eq.s32.totalorder %v1587, 1
    %v1591 = vsel %vm1588, %v1575, %v869
    %v1592 = vsel %vm1589, %v1576, %v871
    %v1593 = vsel %vm1590, %v1577, %v910
    %v1594 = vpack.c.bf16 %v1591, %v1591
    %v1595 = vpack.c.bf16 %v1592, %v1592
    %v1596 = vpack.c.bf16 %v1593, %v1593
    %v1600 = vunpack.c.l.b16 %v1594
    %v1601 = vunpack.c.l.b16 %v1595
    %v1602 = vunpack.c.l.b16 %v1596
    %v1603 = vpack.c.b16 %v1601, %v1600
    %v1604 = vpack.c.b16 %v1602, %v1602
    %1607 = vst [vmem:[#allocation13] sm:$0xff] %v1603
    %1608 = vst [vmem:[#allocation13 + $0x8] sm:$0xf] %v1604
    // Predicated region
    $region62: #{tpu_custom_call.1} parent=1 // pred_check
      _
    $region63: #{tpu_custom_call.1} parent=1 // pred_check_branch
      %1610 = sbr.rel (0) target = $region65
    $region64: #{tpu_custom_call.1} parent=1 // pred_region
      %s1612 = ssub.s32 192, 192
      %1613 = vsyncadd [#allocation4], %s1612
      %s1615 = sshll.u32 [#allocation13], 4
      %s1616 = int_to_ptr.vmem [resolvable:$true] %s1615
      %1618 = dma.vmem_to_hbm [thread:$0]  %s1616, 192, %s9, [#allocation4]
    $region65: #{tpu_custom_call.1} parent=1 // pred_fallthru
      _
    // Predicated region
    $region66: #{tpu_custom_call.1} parent=1 // pred_check
      _
    $region67: #{tpu_custom_call.1} parent=1 // pred_check_branch
      %1620 = sbr.rel (0) target = $region69
    $region68: #{tpu_custom_call.1} parent=1 // pred_region
      %1621 = dma.done [#allocation4], 192
    $region69: #{tpu_custom_call.1} parent=1 // pred_fallthru
      _
    %1622 = vsyncpa [#allocation3], 1
    %1623 = vsyncpa [#allocation6], 1
    %1624 = vsyncpa [#allocation9], 1
    %1625 = vsyncpa [#allocation12], 1
    %1626 = vsyncpa [#allocation4], 1

</llo_original>
